<compile_context>
chip_gen: v7x
topology: tpu7x:2x2x1
jax: 0.10.0
libtpu: 0.0.40
codegen_flags: <defaults>
</compile_context>

<pallas_src>
import functools

import jax
import jax.numpy as jnp
from jax.experimental import pallas as pl
from jax.experimental.pallas import tpu as pltpu

NEG_SLOPE = 0.01  # LeakyReLU negative_slope

D_IN = 784
H1_RAW, H2_RAW, D_OUT = 500, 300, 10
H1, H2 = 512, 384          # lane-padded hidden dims
D_OUT_PAD = 128            # lane-dense output width


def _leaky_relu(x):
    return jnp.where(x > 0, x, NEG_SLOPE * x)


def mlp_kernel(x_ref, w1_ref, b1_ref, w2_ref, b2_ref, w3_ref, b3_ref, o_ref):
    # In-kernel bf16 cast of x (saves a full standalone HBM cast pass).
    x = x_ref[...].astype(jnp.bfloat16)
    h1 = jnp.dot(x, w1_ref[...], preferred_element_type=jnp.float32) + b1_ref[...]
    h1 = _leaky_relu(h1).astype(jnp.bfloat16)
    h2 = jnp.dot(h1, w2_ref[...], preferred_element_type=jnp.float32) + b2_ref[...]
    h2 = _leaky_relu(h2).astype(jnp.bfloat16)
    h3 = jnp.dot(h2, w3_ref[...], preferred_element_type=jnp.float32) + b3_ref[...]
    o_ref[...] = h3.astype(o_ref.dtype)


def _round_up(x, m):
    return -(-x // m) * m


def _choose_tm(B):
    """Batch tile heuristic.

    - multiple of 16 (bf16 packs 16 rows per sublane-packed vreg)
    - tiny batches: a single step
    - larger batches: an even number of grid steps (>=2, for v7x's two
      TensorCores) with per-step tiles as large as possible (<=1024) to
      amortize the ~0.35us per-grid-step overhead, and minimal last-tile
      padding.
    """
    Bp = _round_up(B, 16)
    if Bp <= 32:
        return Bp
    n = 2
    tm = _round_up(-(-Bp // n), 16)
    while tm > 1024:
        n += 2
        tm = _round_up(-(-Bp // n), 16)
    return tm


@functools.partial(jax.jit, static_argnames=("tm",))
def neural_net_forward(x, kernel_params, tm=None):
    """x: (B, 784) float32 -> (B, 10) float32.

    kernel_params: padded/bf16 params from prepare_params().
    """
    w1, b1, w2, b2, w3, b3 = kernel_params
    B = x.shape[0]
    if tm is None:
        tm = _choose_tm(B)
    Bp = _round_up(B, tm)
    if Bp != B:
        x = jnp.pad(x, ((0, Bp - B), (0, 0)))

    # Whole-array, VMEM-resident, single-buffered weights/biases.
    weight_spec = pl.BlockSpec(memory_space=pltpu.MemorySpace.VMEM)

    out = pl.pallas_call(
        mlp_kernel,
        out_shape=jax.ShapeDtypeStruct((Bp, D_OUT_PAD), jnp.float32),
        grid_spec=pltpu.PrefetchScalarGridSpec(
            num_scalar_prefetch=0,
            grid=(Bp // tm,),
            in_specs=[
                # batch tile marches with the grid (f32, cast in-kernel)
                pl.BlockSpec((tm, D_IN), lambda i: (i, 0)),
                # weights / biases: resident for the whole grid
                weight_spec, weight_spec,   # w1, b1
                weight_spec, weight_spec,   # w2, b2
                weight_spec, weight_spec,   # w3, b3
            ],
            out_specs=pl.BlockSpec((tm, D_OUT_PAD), lambda i: (i, 0)),
        ),
        compiler_params=pltpu.CompilerParams(
            dimension_semantics=("parallel",),
            vmem_limit_bytes=32 * 1024 * 1024,
        ),
    )(x, w1, b1, w2, b2, w3, b3)
    return out[:B, :D_OUT]


def init_params(key):
    """PyTorch-style Linear init: U(-1/sqrt(fan_in), 1/sqrt(fan_in)).
    Returned in logical (unpadded) f32 shapes, weights as (in, out)."""
    dims = [(D_IN, H1_RAW), (H1_RAW, H2_RAW), (H2_RAW, D_OUT)]
    params = []
    for fan_in, fan_out in dims:
        key, kw, kb = jax.random.split(key, 3)
        bound = 1.0 / jnp.sqrt(jnp.float32(fan_in))
        w = jax.random.uniform(kw, (fan_in, fan_out), jnp.float32, -bound, bound)
        b = jax.random.uniform(kb, (1, fan_out), jnp.float32, -bound, bound)
        params.extend([w, b])
    return tuple(params)


def prepare_params(params):
    """Pad hidden dims to (512, 384) and the output to 128 lanes, all with
    zeros; cast weights to bf16. Padded columns get zero weight + zero bias
    (LeakyReLU(0)=0), and padded input rows of the next layer are zero, so the
    forward math is identical. Biases stay f32 (added in f32)."""
    w1, b1, w2, b2, w3, b3 = params
    w1p = jnp.zeros((D_IN, H1), jnp.float32).at[:, :H1_RAW].set(w1).astype(jnp.bfloat16)
    b1p = jnp.zeros((1, H1), jnp.float32).at[:, :H1_RAW].set(b1)
    w2p = jnp.zeros((H1, H2), jnp.float32).at[:H1_RAW, :H2_RAW].set(w2).astype(jnp.bfloat16)
    b2p = jnp.zeros((1, H2), jnp.float32).at[:, :H2_RAW].set(b2)
    w3p = jnp.zeros((H2, D_OUT_PAD), jnp.float32).at[:H2_RAW, :D_OUT].set(w3).astype(jnp.bfloat16)
    b3p = jnp.zeros((1, D_OUT_PAD), jnp.float32).at[:, :D_OUT].set(b3)
    return (w1p, b1p, w2p, b2p, w3p, b3p)


if __name__ == "__main__":
    key = jax.random.PRNGKey(0)
    key, kx = jax.random.split(key)
    B = 8
    x = jax.random.normal(kx, (B, D_IN), jnp.float32)
    params = init_params(key)
    kernel_params = prepare_params(params)

    out = neural_net_forward(x, kernel_params)
    out = jax.block_until_ready(out)

    # Reference in plain f32 JAX (same math as the PyTorch forward).
    w1, b1, w2, b2, w3, b3 = params
    h = x @ w1 + b1
    h = jnp.where(h > 0, h, NEG_SLOPE * h)
    h = h @ w2 + b2
    h = jnp.where(h > 0, h, NEG_SLOPE * h)
    ref = h @ w3 + b3

    assert out.shape == (B, D_OUT)
    # bf16 weights/activations on the MXU -> loosened tolerance vs f32 reference.
    assert jnp.allclose(out, ref, atol=5e-2, rtol=5e-2), (
        float(jnp.max(jnp.abs(out - ref))))

    print("KERNEL_OK")
</pallas_src>

<mosaic_0001>
module attributes {stable_mosaic.version = 11 : i64} {
  func.func @mlp_kernel(%arg0: i32, %arg1: memref<16x784xf32, #tpu.memory_space<vmem>>, %arg2: memref<784x512xbf16, #tpu.memory_space<vmem>>, %arg3: memref<1x512xf32, #tpu.memory_space<vmem>>, %arg4: memref<512x384xbf16, #tpu.memory_space<vmem>>, %arg5: memref<1x384xf32, #tpu.memory_space<vmem>>, %arg6: memref<384x128xbf16, #tpu.memory_space<vmem>>, %arg7: memref<1x128xf32, #tpu.memory_space<vmem>>, %arg8: memref<16x128xf32, #tpu.memory_space<vmem>>) attributes {dimension_semantics = [#tpu.dimension_semantics<parallel>], iteration_bounds = array<i64: 1>, scalar_prefetch = 0 : i64, scratch_operands = 0 : i64, tpu.core_type = #tpu.core_type<tc>, window_params = [{transform_indices = @transform_0, window_bounds = array<i64: 16, 784>}, {pipeline_mode = #tpu.pipeline_mode<synchronous>, transform_indices = @transform_1, window_bounds = array<i64: 784, 512>}, {pipeline_mode = #tpu.pipeline_mode<synchronous>, transform_indices = @transform_2, window_bounds = array<i64: 1, 512>}, {pipeline_mode = #tpu.pipeline_mode<synchronous>, transform_indices = @transform_3, window_bounds = array<i64: 512, 384>}, {pipeline_mode = #tpu.pipeline_mode<synchronous>, transform_indices = @transform_4, window_bounds = array<i64: 1, 384>}, {pipeline_mode = #tpu.pipeline_mode<synchronous>, transform_indices = @transform_5, window_bounds = array<i64: 384, 128>}, {pipeline_mode = #tpu.pipeline_mode<synchronous>, transform_indices = @transform_6, window_bounds = array<i64: 1, 128>}, {transform_indices = @transform_7, window_bounds = array<i64: 16, 128>}]} {
    %c0 = arith.constant 0 : index
    %c0_0 = arith.constant 0 : index
    %0 = vector.load %arg1[%c0, %c0_0] : memref<16x784xf32, #tpu.memory_space<vmem>>, vector<16x784xf32>
    %1 = arith.truncf %0 : vector<16x784xf32> to vector<16x784xbf16>
    %c0_1 = arith.constant 0 : index
    %c0_2 = arith.constant 0 : index
    %2 = vector.load %arg2[%c0_1, %c0_2] : memref<784x512xbf16, #tpu.memory_space<vmem>>, vector<784x512xbf16>
    %cst = arith.constant dense<0.000000e+00> : vector<16x512xf32>
    %3 = tpu.matmul %1, %2, %cst {dimension_numbers = #tpu.dot_dimension_numbers<[1], [0], [0], [1], [0, 0, 1, 1], [], []>} : vector<16x784xbf16>, vector<784x512xbf16>, vector<16x512xf32> -> vector<16x512xf32>
    %c0_3 = arith.constant 0 : index
    %c0_4 = arith.constant 0 : index
    %4 = vector.load %arg3[%c0_3, %c0_4] : memref<1x512xf32, #tpu.memory_space<vmem>>, vector<1x512xf32>
    %5 = vector.broadcast %4 : vector<1x512xf32> to vector<16x512xf32>
    %6 = arith.addf %3, %5 : vector<16x512xf32>
    %cst_5 = arith.constant 0.000000e+00 : f32
    %7 = vector.broadcast %cst_5 : f32 to vector<16x512xf32>
    %8 = arith.cmpf ogt, %6, %7 : vector<16x512xf32>
    %cst_6 = arith.constant 0.00999999977 : f32
    %9 = vector.broadcast %cst_6 : f32 to vector<16x512xf32>
    %10 = arith.mulf %9, %6 : vector<16x512xf32>
    %11 = arith.select %8, %6, %10 : vector<16x512xi1>, vector<16x512xf32>
    %12 = arith.truncf %11 : vector<16x512xf32> to vector<16x512xbf16>
    %c0_7 = arith.constant 0 : index
    %c0_8 = arith.constant 0 : index
    %13 = vector.load %arg4[%c0_7, %c0_8] : memref<512x384xbf16, #tpu.memory_space<vmem>>, vector<512x384xbf16>
    %cst_9 = arith.constant dense<0.000000e+00> : vector<16x384xf32>
    %14 = tpu.matmul %12, %13, %cst_9 {dimension_numbers = #tpu.dot_dimension_numbers<[1], [0], [0], [1], [0, 0, 1, 1], [], []>} : vector<16x512xbf16>, vector<512x384xbf16>, vector<16x384xf32> -> vector<16x384xf32>
    %c0_10 = arith.constant 0 : index
    %c0_11 = arith.constant 0 : index
    %15 = vector.load %arg5[%c0_10, %c0_11] : memref<1x384xf32, #tpu.memory_space<vmem>>, vector<1x384xf32>
    %16 = vector.broadcast %15 : vector<1x384xf32> to vector<16x384xf32>
    %17 = arith.addf %14, %16 : vector<16x384xf32>
    %cst_12 = arith.constant 0.000000e+00 : f32
    %18 = vector.broadcast %cst_12 : f32 to vector<16x384xf32>
    %19 = arith.cmpf ogt, %17, %18 : vector<16x384xf32>
    %cst_13 = arith.constant 0.00999999977 : f32
    %20 = vector.broadcast %cst_13 : f32 to vector<16x384xf32>
    %21 = arith.mulf %20, %17 : vector<16x384xf32>
    %22 = arith.select %19, %17, %21 : vector<16x384xi1>, vector<16x384xf32>
    %23 = arith.truncf %22 : vector<16x384xf32> to vector<16x384xbf16>
    %c0_14 = arith.constant 0 : index
    %c0_15 = arith.constant 0 : index
    %24 = vector.load %arg6[%c0_14, %c0_15] : memref<384x128xbf16, #tpu.memory_space<vmem>>, vector<384x128xbf16>
    %cst_16 = arith.constant dense<0.000000e+00> : vector<16x128xf32>
    %25 = tpu.matmul %23, %24, %cst_16 {dimension_numbers = #tpu.dot_dimension_numbers<[1], [0], [0], [1], [0, 0, 1, 1], [], []>} : vector<16x384xbf16>, vector<384x128xbf16>, vector<16x128xf32> -> vector<16x128xf32>
    %c0_17 = arith.constant 0 : index
    %c0_18 = arith.constant 0 : index
    %26 = vector.load %arg7[%c0_17, %c0_18] : memref<1x128xf32, #tpu.memory_space<vmem>>, vector<1x128xf32>
    %27 = vector.broadcast %26 : vector<1x128xf32> to vector<16x128xf32>
    %28 = arith.addf %25, %27 : vector<16x128xf32>
    %c0_19 = arith.constant 0 : index
    %c0_20 = arith.constant 0 : index
    %29 = vector.load %arg8[%c0_19, %c0_20] : memref<16x128xf32, #tpu.memory_space<vmem>>, vector<16x128xf32>
    tpu.vector_store %arg8[%c0_19, %c0_20], %28 {strides = array<i32>} : memref<16x128xf32, #tpu.memory_space<vmem>>, vector<16x128xf32>,
    return
  }
  func.func @transform_0(%arg0: i32) -> (i32, i32) {
    %c0_i32 = arith.constant 0 : i32
    %c0_i32_0 = arith.constant 0 : i32
    return %arg0, %c0_i32 : i32, i32
  }
  func.func @transform_1(%arg0: i32) -> (i32, i32) {
    %c0_i32 = arith.constant 0 : i32
    %c0_i32_0 = arith.constant 0 : i32
    %c0_i32_1 = arith.constant 0 : i32
    return %c0_i32, %c0_i32_0 : i32, i32
  }
  func.func @transform_2(%arg0: i32) -> (i32, i32) {
    %c0_i32 = arith.constant 0 : i32
    %c0_i32_0 = arith.constant 0 : i32
    %c0_i32_1 = arith.constant 0 : i32
    return %c0_i32, %c0_i32_0 : i32, i32
  }
  func.func @transform_3(%arg0: i32) -> (i32, i32) {
    %c0_i32 = arith.constant 0 : i32
    %c0_i32_0 = arith.constant 0 : i32
    %c0_i32_1 = arith.constant 0 : i32
    return %c0_i32, %c0_i32_0 : i32, i32
  }
  func.func @transform_4(%arg0: i32) -> (i32, i32) {
    %c0_i32 = arith.constant 0 : i32
    %c0_i32_0 = arith.constant 0 : i32
    %c0_i32_1 = arith.constant 0 : i32
    return %c0_i32, %c0_i32_0 : i32, i32
  }
  func.func @transform_5(%arg0: i32) -> (i32, i32) {
    %c0_i32 = arith.constant 0 : i32
    %c0_i32_0 = arith.constant 0 : i32
    %c0_i32_1 = arith.constant 0 : i32
    return %c0_i32, %c0_i32_0 : i32, i32
  }
  func.func @transform_6(%arg0: i32) -> (i32, i32) {
    %c0_i32 = arith.constant 0 : i32
    %c0_i32_0 = arith.constant 0 : i32
    %c0_i32_1 = arith.constant 0 : i32
    return %c0_i32, %c0_i32_0 : i32, i32
  }
  func.func @transform_7(%arg0: i32) -> (i32, i32) {
    %c0_i32 = arith.constant 0 : i32
    %c0_i32_0 = arith.constant 0 : i32
    return %arg0, %c0_i32 : i32, i32
  }
}

</mosaic_0001>

<llo_original>
// kernel: neural_net_forward.1
$region0: #{neural_net_forward.1}
  #allocation0 [shape = 'u32[]', space=smem, size = 0x4, offset = 0x4, fixed_abs, tag = 'smem constant byte address 0x4 - core index']
  #allocation1 [shape = 'u32[144,128]{1,0:T(1,128)}', space=vmem, size = 0x12000, scoped, tag = 'internal scratch']
  %s0 = inlined_call_operand.vmem [shape: f32[16,784], index: 0, kind: input, shape index: {}]
  %s1 = inlined_call_operand.hbm [shape: bf16[784,512], index: 1, kind: input, shape index: {}]
  %s2 = inlined_call_operand.vmem [shape: f32[1,512], index: 2, kind: input, shape index: {}]
  %s3 = inlined_call_operand.hbm [shape: bf16[512,384], index: 3, kind: input, shape index: {}]
  %s4 = inlined_call_operand.vmem [shape: f32[1,384], index: 4, kind: input, shape index: {}]
  %s5 = inlined_call_operand.hbm [shape: bf16[384,128], index: 5, kind: input, shape index: {}]
  %s6 = inlined_call_operand.vmem [shape: f32[1,128], index: 6, kind: input, shape index: {}]
  %s7 = inlined_call_operand.vmem [shape: f32[16,128], index: 7, kind: output, shape index: {}]
  %s8 = sld [smem:[#allocation0]]
  $region50: #{neural_net_forward.1} parent=0
    _
  %s10 = ssub.s32 1, %s8
  %s11 = scalar_select 0, %s10, %s8
  $region1: #{neural_net_forward.1} parent=0
    #allocation2 [shape = 'u8[802816]{0}', space=vmem, size = 0xc4000, scoped, tag = 'input window, operand 1, single buffered']
    #allocation3 [shape = 's32[1]{0}', space=sflag, size = 0x4, scoped, tag = 'scoped memory for neural_net_forward.1']
    #allocation4 [shape = 'u8[393216]{0}', space=vmem, size = 0x60000, scoped, tag = 'input window, operand 3, single buffered']
    #allocation5 [shape = 's32[1]{0}', space=sflag, size = 0x4, scoped, tag = 'scoped memory for neural_net_forward.1']
    #allocation6 [shape = 'u8[98304]{0}', space=vmem, size = 0x18000, scoped, tag = 'input window, operand 5, single buffered']
    %12 = vsyncpa [#allocation3], 0
    %13 = vsyncpa [#allocation5], 0
    // Predicated region
    $region2: #{neural_net_forward.1} parent=1 // pred_check
      _
    $region3: #{neural_net_forward.1} parent=1 // pred_check_branch
      %15 = sbr.rel (0) target = $region5
    $region4: #{neural_net_forward.1} parent=1 // pred_region
      _
    $region5: #{neural_net_forward.1} parent=1 // pred_fallthru
      _
    // Predicated region
    $region6: #{neural_net_forward.1} parent=1 // pred_check
      _
    $region7: #{neural_net_forward.1} parent=1 // pred_check_branch
      %17 = sbr.rel (0) target = $region9
    $region8: #{neural_net_forward.1} parent=1 // pred_region
      %s19 = ssub.s32 25088, 25088
      %20 = vsyncadd [#allocation3], %s19
      %s21 = sshll.u32 [#allocation2], 4
      %s22 = int_to_ptr.vmem [resolvable:$true] %s21
      %27 = dma.hbm_to_vmem [thread:$0]  %s1, 25088, %s22, [#allocation3], 256, 256, 16
    $region9: #{neural_net_forward.1} parent=1 // pred_fallthru
      _
    // Predicated region
    $region10: #{neural_net_forward.1} parent=1 // pred_check
      _
    $region11: #{neural_net_forward.1} parent=1 // pred_check_branch
      %29 = sbr.rel (0) target = $region13
    $region12: #{neural_net_forward.1} parent=1 // pred_region
      _
    $region13: #{neural_net_forward.1} parent=1 // pred_fallthru
      _
    // Predicated region
    $region14: #{neural_net_forward.1} parent=1 // pred_check
      _
    $region15: #{neural_net_forward.1} parent=1 // pred_check_branch
      %31 = sbr.rel (0) target = $region17
    $region16: #{neural_net_forward.1} parent=1 // pred_region
      %s33 = ssub.s32 12288, 12288
      %34 = vsyncadd [#allocation5], %s33
      %s35 = sshll.u32 [#allocation4], 4
      %s36 = int_to_ptr.vmem [resolvable:$true] %s35
      %41 = dma.hbm_to_vmem [thread:$0]  %s3, 12288, %s36, [#allocation5], 192, 192, 12
    $region17: #{neural_net_forward.1} parent=1 // pred_fallthru
      _
    // Predicated region
    $region18: #{neural_net_forward.1} parent=1 // pred_check
      _
    $region19: #{neural_net_forward.1} parent=1 // pred_check_branch
      %43 = sbr.rel (0) target = $region21
    $region20: #{neural_net_forward.1} parent=1 // pred_region
      _
    $region21: #{neural_net_forward.1} parent=1 // pred_fallthru
      _
    // Predicated region
    $region22: #{neural_net_forward.1} parent=1 // pred_check
      _
    $region23: #{neural_net_forward.1} parent=1 // pred_check_branch
      %45 = sbr.rel (0) target = $region25
    $region24: #{neural_net_forward.1} parent=1 // pred_region
      %s47 = ssub.s32 3072, 3072
      %48 = vsyncadd [#allocation5], %s47
      %s49 = sshll.u32 [#allocation6], 4
      %s50 = int_to_ptr.vmem [resolvable:$true] %s49
      %55 = dma.hbm_to_vmem [thread:$0]  %s5, 3072, %s50, [#allocation5], 64, 64, 4
    $region25: #{neural_net_forward.1} parent=1 // pred_fallthru
      _
    // Predicated region
    $region26: #{neural_net_forward.1} parent=1 // pred_check
      _
    $region27: #{neural_net_forward.1} parent=1 // pred_check_branch
      %57 = sbr.rel (0) target = $region29
    $region28: #{neural_net_forward.1} parent=1 // pred_region
      _
    $region29: #{neural_net_forward.1} parent=1 // pred_fallthru
      _
    // Predicated region
    $region30: #{neural_net_forward.1} parent=1 // pred_check
      _
    $region31: #{neural_net_forward.1} parent=1 // pred_check_branch
      %59 = sbr.rel (0) target = $region33
    $region32: #{neural_net_forward.1} parent=1 // pred_region
      %60 = dma.done [#allocation3], 25088
    $region33: #{neural_net_forward.1} parent=1 // pred_fallthru
      _
    // Predicated region
    $region34: #{neural_net_forward.1} parent=1 // pred_check
      _
    $region35: #{neural_net_forward.1} parent=1 // pred_check_branch
      %62 = sbr.rel (0) target = $region37
    $region36: #{neural_net_forward.1} parent=1 // pred_region
      %63 = dma.done [#allocation5], 12288
    $region37: #{neural_net_forward.1} parent=1 // pred_fallthru
      _
    // Predicated region
    $region38: #{neural_net_forward.1} parent=1 // pred_check
      _
    $region39: #{neural_net_forward.1} parent=1 // pred_check_branch
      %65 = sbr.rel (0) target = $region41
    $region40: #{neural_net_forward.1} parent=1 // pred_region
      %66 = dma.done [#allocation5], 3072
    $region41: #{neural_net_forward.1} parent=1 // pred_fallthru
      _
    %v68 = vld [vmem:[%s0] sm:$0xff]
    %v69 = vld [vmem:[%s0 + $0x8] sm:$0xff]
    %v70 = vld [vmem:[%s0 + $0x10] sm:$0xff]
    %v71 = vld [vmem:[%s0 + $0x18] sm:$0xff]
    %v72 = vld [vmem:[%s0 + $0x20] sm:$0xff]
    %v73 = vld [vmem:[%s0 + $0x28] sm:$0xff]
    %v74 = vld [vmem:[%s0 + $0x30] sm:$0xff]
    %v75 = vld [vmem:[%s0 + $0x38] sm:$0xff]
    %v76 = vld [vmem:[%s0 + $0x40] sm:$0xff]
    %v77 = vld [vmem:[%s0 + $0x48] sm:$0xff]
    %v78 = vld [vmem:[%s0 + $0x50] sm:$0xff]
    %v79 = vld [vmem:[%s0 + $0x58] sm:$0xff]
    %v80 = vld [vmem:[%s0 + $0x60] sm:$0xff]
    %v81 = vld [vmem:[%s0 + $0x68] sm:$0xff]
    %v82 = vpack.c.bf16 %v75, %v68
    %v83 = vpack.c.bf16 %v76, %v69
    %v84 = vpack.c.bf16 %v77, %v70
    %v85 = vpack.c.bf16 %v78, %v71
    %v86 = vpack.c.bf16 %v79, %v72
    %v87 = vpack.c.bf16 %v80, %v73
    %v88 = vpack.c.bf16 %v81, %v74
    %v89 = vld [vmem:[#allocation2] sm:$0xff]
    %v90 = vld [vmem:[#allocation2 + $0x8] sm:$0xff]
    %v91 = vld [vmem:[#allocation2 + $0x10] sm:$0xff]
    %v92 = vld [vmem:[#allocation2 + $0x18] sm:$0xff]
    %v93 = vld [vmem:[#allocation2 + $0x20] sm:$0xff]
    %v94 = vld [vmem:[#allocation2 + $0x28] sm:$0xff]
    %v95 = vld [vmem:[#allocation2 + $0x30] sm:$0xff]
    %v96 = vld [vmem:[#allocation2 + $0x38] sm:$0xff]
    %v97 = vld [vmem:[#allocation2 + $0x40] sm:$0xff]
    %v98 = vld [vmem:[#allocation2 + $0x48] sm:$0xff]
    %v99 = vld [vmem:[#allocation2 + $0x50] sm:$0xff]
    %v100 = vld [vmem:[#allocation2 + $0x58] sm:$0xff]
    %v101 = vld [vmem:[#allocation2 + $0x60] sm:$0xff]
    %v102 = vld [vmem:[#allocation2 + $0x68] sm:$0xff]
    %v103 = vld [vmem:[#allocation2 + $0x70] sm:$0xff]
    %v104 = vld [vmem:[#allocation2 + $0x78] sm:$0xff]
    %v105 = vld [vmem:[#allocation2 + $0x80] sm:$0xff]
    %v106 = vld [vmem:[#allocation2 + $0x88] sm:$0xff]
    %v107 = vld [vmem:[#allocation2 + $0x90] sm:$0xff]
    %v108 = vld [vmem:[#allocation2 + $0x98] sm:$0xff]
    %v109 = vld [vmem:[#allocation2 + $0xa0] sm:$0xff]
    %v110 = vld [vmem:[#allocation2 + $0xa8] sm:$0xff]
    %v111 = vld [vmem:[#allocation2 + $0xb0] sm:$0xff]
    %v112 = vld [vmem:[#allocation2 + $0xb8] sm:$0xff]
    %v113 = vld [vmem:[#allocation2 + $0xc0] sm:$0xff]
    %v114 = vld [vmem:[#allocation2 + $0xc8] sm:$0xff]
    %v115 = vld [vmem:[#allocation2 + $0xd0] sm:$0xff]
    %v116 = vld [vmem:[#allocation2 + $0xd8] sm:$0xff]
    %v117 = vld [vmem:[#allocation2 + $0xe0] sm:$0xff]
    %v118 = vld [vmem:[#allocation2 + $0xe8] sm:$0xff]
    %v119 = vld [vmem:[#allocation2 + $0xf0] sm:$0xff]
    %v120 = vld [vmem:[#allocation2 + $0xf8] sm:$0xff]
    %v121 = vld [vmem:[#allocation2 + $0x100] sm:$0xff]
    %v122 = vld [vmem:[#allocation2 + $0x108] sm:$0xff]
    %v123 = vld [vmem:[#allocation2 + $0x110] sm:$0xff]
    %v124 = vld [vmem:[#allocation2 + $0x118] sm:$0xff]
    %v125 = vld [vmem:[#allocation2 + $0x120] sm:$0xff]
    %v126 = vld [vmem:[#allocation2 + $0x128] sm:$0xff]
    %v127 = vld [vmem:[#allocation2 + $0x130] sm:$0xff]
    %v128 = vld [vmem:[#allocation2 + $0x138] sm:$0xff]
    %v129 = vld [vmem:[#allocation2 + $0x140] sm:$0xff]
    %v130 = vld [vmem:[#allocation2 + $0x148] sm:$0xff]
    %v131 = vld [vmem:[#allocation2 + $0x150] sm:$0xff]
    %v132 = vld [vmem:[#allocation2 + $0x158] sm:$0xff]
    %v133 = vld [vmem:[#allocation2 + $0x160] sm:$0xff]
    %v134 = vld [vmem:[#allocation2 + $0x168] sm:$0xff]
    %v135 = vld [vmem:[#allocation2 + $0x170] sm:$0xff]
    %v136 = vld [vmem:[#allocation2 + $0x178] sm:$0xff]
    %v137 = vld [vmem:[#allocation2 + $0x180] sm:$0xff]
    %v138 = vld [vmem:[#allocation2 + $0x188] sm:$0xff]
    %v139 = vld [vmem:[#allocation2 + $0x190] sm:$0xff]
    %v140 = vld [vmem:[#allocation2 + $0x198] sm:$0xff]
    %v141 = vld [vmem:[#allocation2 + $0x1a0] sm:$0xff]
    %v142 = vld [vmem:[#allocation2 + $0x1a8] sm:$0xff]
    %v143 = vld [vmem:[#allocation2 + $0x1b0] sm:$0xff]
    %v144 = vld [vmem:[#allocation2 + $0x1b8] sm:$0xff]
    %v145 = vld [vmem:[#allocation2 + $0x1c0] sm:$0xff]
    %v146 = vld [vmem:[#allocation2 + $0x1c8] sm:$0xff]
    %v147 = vld [vmem:[#allocation2 + $0x1d0] sm:$0xff]
    %v148 = vld [vmem:[#allocation2 + $0x1d8] sm:$0xff]
    %v149 = vld [vmem:[#allocation2 + $0x1e0] sm:$0xff]
    %v150 = vld [vmem:[#allocation2 + $0x1e8] sm:$0xff]
    %v151 = vld [vmem:[#allocation2 + $0x1f0] sm:$0xff]
    %v152 = vld [vmem:[#allocation2 + $0x1f8] sm:$0xff]
    %v153 = vld [vmem:[#allocation2 + $0x200] sm:$0xff]
    %v154 = vld [vmem:[#allocation2 + $0x208] sm:$0xff]
    %v155 = vld [vmem:[#allocation2 + $0x210] sm:$0xff]
    %v156 = vld [vmem:[#allocation2 + $0x218] sm:$0xff]
    %v157 = vld [vmem:[#allocation2 + $0x220] sm:$0xff]
    %v158 = vld [vmem:[#allocation2 + $0x228] sm:$0xff]
    %v159 = vld [vmem:[#allocation2 + $0x230] sm:$0xff]
    %v160 = vld [vmem:[#allocation2 + $0x238] sm:$0xff]
    %v161 = vld [vmem:[#allocation2 + $0x240] sm:$0xff]
    %v162 = vld [vmem:[#allocation2 + $0x248] sm:$0xff]
    %v163 = vld [vmem:[#allocation2 + $0x250] sm:$0xff]
    %v164 = vld [vmem:[#allocation2 + $0x258] sm:$0xff]
    %v165 = vld [vmem:[#allocation2 + $0x260] sm:$0xff]
    %v166 = vld [vmem:[#allocation2 + $0x268] sm:$0xff]
    %v167 = vld [vmem:[#allocation2 + $0x270] sm:$0xff]
    %v168 = vld [vmem:[#allocation2 + $0x278] sm:$0xff]
    %v169 = vld [vmem:[#allocation2 + $0x280] sm:$0xff]
    %v170 = vld [vmem:[#allocation2 + $0x288] sm:$0xff]
    %v171 = vld [vmem:[#allocation2 + $0x290] sm:$0xff]
    %v172 = vld [vmem:[#allocation2 + $0x298] sm:$0xff]
    %v173 = vld [vmem:[#allocation2 + $0x2a0] sm:$0xff]
    %v174 = vld [vmem:[#allocation2 + $0x2a8] sm:$0xff]
    %v175 = vld [vmem:[#allocation2 + $0x2b0] sm:$0xff]
    %v176 = vld [vmem:[#allocation2 + $0x2b8] sm:$0xff]
    %v177 = vld [vmem:[#allocation2 + $0x2c0] sm:$0xff]
    %v178 = vld [vmem:[#allocation2 + $0x2c8] sm:$0xff]
    %v179 = vld [vmem:[#allocation2 + $0x2d0] sm:$0xff]
    %v180 = vld [vmem:[#allocation2 + $0x2d8] sm:$0xff]
    %v181 = vld [vmem:[#allocation2 + $0x2e0] sm:$0xff]
    %v182 = vld [vmem:[#allocation2 + $0x2e8] sm:$0xff]
    %v183 = vld [vmem:[#allocation2 + $0x2f0] sm:$0xff]
    %v184 = vld [vmem:[#allocation2 + $0x2f8] sm:$0xff]
    %v185 = vld [vmem:[#allocation2 + $0x300] sm:$0xff]
    %v186 = vld [vmem:[#allocation2 + $0x308] sm:$0xff]
    %v187 = vld [vmem:[#allocation2 + $0x310] sm:$0xff]
    %v188 = vld [vmem:[#allocation2 + $0x318] sm:$0xff]
    %v189 = vld [vmem:[#allocation2 + $0x320] sm:$0xff]
    %v190 = vld [vmem:[#allocation2 + $0x328] sm:$0xff]
    %v191 = vld [vmem:[#allocation2 + $0x330] sm:$0xff]
    %v192 = vld [vmem:[#allocation2 + $0x338] sm:$0xff]
    %v193 = vld [vmem:[#allocation2 + $0x340] sm:$0xff]
    %v194 = vld [vmem:[#allocation2 + $0x348] sm:$0xff]
    %v195 = vld [vmem:[#allocation2 + $0x350] sm:$0xff]
    %v196 = vld [vmem:[#allocation2 + $0x358] sm:$0xff]
    %v197 = vld [vmem:[#allocation2 + $0x360] sm:$0xff]
    %v198 = vld [vmem:[#allocation2 + $0x368] sm:$0xff]
    %v199 = vld [vmem:[#allocation2 + $0x370] sm:$0xff]
    %v200 = vld [vmem:[#allocation2 + $0x378] sm:$0xff]
    %v201 = vld [vmem:[#allocation2 + $0x380] sm:$0xff]
    %v202 = vld [vmem:[#allocation2 + $0x388] sm:$0xff]
    %v203 = vld [vmem:[#allocation2 + $0x390] sm:$0xff]
    %v204 = vld [vmem:[#allocation2 + $0x398] sm:$0xff]
    %v205 = vld [vmem:[#allocation2 + $0x3a0] sm:$0xff]
    %v206 = vld [vmem:[#allocation2 + $0x3a8] sm:$0xff]
    %v207 = vld [vmem:[#allocation2 + $0x3b0] sm:$0xff]
    %v208 = vld [vmem:[#allocation2 + $0x3b8] sm:$0xff]
    %v209 = vld [vmem:[#allocation2 + $0x3c0] sm:$0xff]
    %v210 = vld [vmem:[#allocation2 + $0x3c8] sm:$0xff]
    %v211 = vld [vmem:[#allocation2 + $0x3d0] sm:$0xff]
    %v212 = vld [vmem:[#allocation2 + $0x3d8] sm:$0xff]
    %v213 = vld [vmem:[#allocation2 + $0x3e0] sm:$0xff]
    %v214 = vld [vmem:[#allocation2 + $0x3e8] sm:$0xff]
    %v215 = vld [vmem:[#allocation2 + $0x3f0] sm:$0xff]
    %v216 = vld [vmem:[#allocation2 + $0x3f8] sm:$0xff]
    %v217 = vld [vmem:[#allocation2 + $0x400] sm:$0xff]
    %v218 = vld [vmem:[#allocation2 + $0x408] sm:$0xff]
    %v219 = vld [vmem:[#allocation2 + $0x410] sm:$0xff]
    %v220 = vld [vmem:[#allocation2 + $0x418] sm:$0xff]
    %v221 = vld [vmem:[#allocation2 + $0x420] sm:$0xff]
    %v222 = vld [vmem:[#allocation2 + $0x428] sm:$0xff]
    %v223 = vld [vmem:[#allocation2 + $0x430] sm:$0xff]
    %v224 = vld [vmem:[#allocation2 + $0x438] sm:$0xff]
    %v225 = vld [vmem:[#allocation2 + $0x440] sm:$0xff]
    %v226 = vld [vmem:[#allocation2 + $0x448] sm:$0xff]
    %v227 = vld [vmem:[#allocation2 + $0x450] sm:$0xff]
    %v228 = vld [vmem:[#allocation2 + $0x458] sm:$0xff]
    %v229 = vld [vmem:[#allocation2 + $0x460] sm:$0xff]
    %v230 = vld [vmem:[#allocation2 + $0x468] sm:$0xff]
    %v231 = vld [vmem:[#allocation2 + $0x470] sm:$0xff]
    %v232 = vld [vmem:[#allocation2 + $0x478] sm:$0xff]
    %v233 = vld [vmem:[#allocation2 + $0x480] sm:$0xff]
    %v234 = vld [vmem:[#allocation2 + $0x488] sm:$0xff]
    %v235 = vld [vmem:[#allocation2 + $0x490] sm:$0xff]
    %v236 = vld [vmem:[#allocation2 + $0x498] sm:$0xff]
    %v237 = vld [vmem:[#allocation2 + $0x4a0] sm:$0xff]
    %v238 = vld [vmem:[#allocation2 + $0x4a8] sm:$0xff]
    %v239 = vld [vmem:[#allocation2 + $0x4b0] sm:$0xff]
    %v240 = vld [vmem:[#allocation2 + $0x4b8] sm:$0xff]
    %v241 = vld [vmem:[#allocation2 + $0x4c0] sm:$0xff]
    %v242 = vld [vmem:[#allocation2 + $0x4c8] sm:$0xff]
    %v243 = vld [vmem:[#allocation2 + $0x4d0] sm:$0xff]
    %v244 = vld [vmem:[#allocation2 + $0x4d8] sm:$0xff]
    %v245 = vld [vmem:[#allocation2 + $0x4e0] sm:$0xff]
    %v246 = vld [vmem:[#allocation2 + $0x4e8] sm:$0xff]
    %v247 = vld [vmem:[#allocation2 + $0x4f0] sm:$0xff]
    %v248 = vld [vmem:[#allocation2 + $0x4f8] sm:$0xff]
    %v249 = vld [vmem:[#allocation2 + $0x500] sm:$0xff]
    %v250 = vld [vmem:[#allocation2 + $0x508] sm:$0xff]
    %v251 = vld [vmem:[#allocation2 + $0x510] sm:$0xff]
    %v252 = vld [vmem:[#allocation2 + $0x518] sm:$0xff]
    %v253 = vld [vmem:[#allocation2 + $0x520] sm:$0xff]
    %v254 = vld [vmem:[#allocation2 + $0x528] sm:$0xff]
    %v255 = vld [vmem:[#allocation2 + $0x530] sm:$0xff]
    %v256 = vld [vmem:[#allocation2 + $0x538] sm:$0xff]
    %v257 = vld [vmem:[#allocation2 + $0x540] sm:$0xff]
    %v258 = vld [vmem:[#allocation2 + $0x548] sm:$0xff]
    %v259 = vld [vmem:[#allocation2 + $0x550] sm:$0xff]
    %v260 = vld [vmem:[#allocation2 + $0x558] sm:$0xff]
    %v261 = vld [vmem:[#allocation2 + $0x560] sm:$0xff]
    %v262 = vld [vmem:[#allocation2 + $0x568] sm:$0xff]
    %v263 = vld [vmem:[#allocation2 + $0x570] sm:$0xff]
    %v264 = vld [vmem:[#allocation2 + $0x578] sm:$0xff]
    %v265 = vld [vmem:[#allocation2 + $0x580] sm:$0xff]
    %v266 = vld [vmem:[#allocation2 + $0x588] sm:$0xff]
    %v267 = vld [vmem:[#allocation2 + $0x590] sm:$0xff]
    %v268 = vld [vmem:[#allocation2 + $0x598] sm:$0xff]
    %v269 = vld [vmem:[#allocation2 + $0x5a0] sm:$0xff]
    %v270 = vld [vmem:[#allocation2 + $0x5a8] sm:$0xff]
    %v271 = vld [vmem:[#allocation2 + $0x5b0] sm:$0xff]
    %v272 = vld [vmem:[#allocation2 + $0x5b8] sm:$0xff]
    %v273 = vld [vmem:[#allocation2 + $0x5c0] sm:$0xff]
    %v274 = vld [vmem:[#allocation2 + $0x5c8] sm:$0xff]
    %v275 = vld [vmem:[#allocation2 + $0x5d0] sm:$0xff]
    %v276 = vld [vmem:[#allocation2 + $0x5d8] sm:$0xff]
    %v277 = vld [vmem:[#allocation2 + $0x5e0] sm:$0xff]
    %v278 = vld [vmem:[#allocation2 + $0x5e8] sm:$0xff]
    %v279 = vld [vmem:[#allocation2 + $0x5f0] sm:$0xff]
    %v280 = vld [vmem:[#allocation2 + $0x5f8] sm:$0xff]
    %v281 = vld [vmem:[#allocation2 + $0x600] sm:$0xff]
    %v282 = vld [vmem:[#allocation2 + $0x608] sm:$0xff]
    %v283 = vld [vmem:[#allocation2 + $0x610] sm:$0xff]
    %v284 = vld [vmem:[#allocation2 + $0x618] sm:$0xff]
    %v285 = vld [vmem:[%s2] sm:$0xf]
    %v287 = vlaneseq
    %v288 = vshrl.u32 %v287, 7
    %v289 = vsub.s32 0, %v288
    %v290 = vrot.slane %v285, %v289
    %v291 = vlaneseq
    %v292 = vshrl.u32 %v291, 7
    %v293 = vsub.s32 1, %v292
    %v294 = vrot.slane %v285, %v293
    %v295 = vlaneseq
    %v296 = vshrl.u32 %v295, 7
    %v297 = vsub.s32 2, %v296
    %v298 = vrot.slane %v285, %v297
    %v299 = vlaneseq
    %v300 = vshrl.u32 %v299, 7
    %v301 = vsub.s32 3, %v300
    %v302 = vrot.slane %v285, %v301
    %v503 = vunpack.c.l.b16 %v89
    %v504 = vunpack.c.h.b16 %v89
    %v505 = vunpack.c.l.b16 %v90
    %v506 = vunpack.c.h.b16 %v90
    %v507 = vunpack.c.l.b16 %v91
    %v508 = vunpack.c.h.b16 %v91
    %v509 = vunpack.c.l.b16 %v92
    %v510 = vunpack.c.h.b16 %v92
    %v511 = vunpack.c.l.b16 %v93
    %v512 = vunpack.c.h.b16 %v93
    %v513 = vunpack.c.l.b16 %v94
    %v514 = vunpack.c.h.b16 %v94
    %v515 = vunpack.c.l.b16 %v95
    %v516 = vunpack.c.h.b16 %v95
    %v517 = vunpack.c.l.b16 %v96
    %v518 = vunpack.c.h.b16 %v96
    %v519 = vunpack.c.l.b16 %v97
    %v520 = vunpack.c.h.b16 %v97
    %v521 = vunpack.c.l.b16 %v98
    %v522 = vunpack.c.h.b16 %v98
    %v523 = vunpack.c.l.b16 %v99
    %v524 = vunpack.c.h.b16 %v99
    %v525 = vunpack.c.l.b16 %v100
    %v526 = vunpack.c.h.b16 %v100
    %v527 = vunpack.c.l.b16 %v101
    %v528 = vunpack.c.h.b16 %v101
    %v529 = vunpack.c.l.b16 %v102
    %v530 = vunpack.c.h.b16 %v102
    %v531 = vunpack.c.l.b16 %v103
    %v532 = vunpack.c.h.b16 %v103
    %v533 = vunpack.c.l.b16 %v104
    %v534 = vunpack.c.h.b16 %v104
    %v535 = vunpack.c.l.b16 %v105
    %v536 = vunpack.c.h.b16 %v105
    %v537 = vunpack.c.l.b16 %v106
    %v538 = vunpack.c.h.b16 %v106
    %v539 = vunpack.c.l.b16 %v107
    %v540 = vunpack.c.h.b16 %v107
    %v541 = vunpack.c.l.b16 %v108
    %v542 = vunpack.c.h.b16 %v108
    %v543 = vunpack.c.l.b16 %v109
    %v544 = vunpack.c.h.b16 %v109
    %v545 = vunpack.c.l.b16 %v110
    %v546 = vunpack.c.h.b16 %v110
    %v547 = vunpack.c.l.b16 %v111
    %v548 = vunpack.c.h.b16 %v111
    %v549 = vunpack.c.l.b16 %v112
    %v550 = vunpack.c.h.b16 %v112
    %v551 = vunpack.c.l.b16 %v113
    %v552 = vunpack.c.h.b16 %v113
    %v553 = vunpack.c.l.b16 %v114
    %v554 = vunpack.c.h.b16 %v114
    %v555 = vunpack.c.l.b16 %v115
    %v556 = vunpack.c.h.b16 %v115
    %v557 = vunpack.c.l.b16 %v116
    %v558 = vunpack.c.h.b16 %v116
    %v559 = vunpack.c.l.b16 %v117
    %v560 = vunpack.c.h.b16 %v117
    %v561 = vunpack.c.l.b16 %v118
    %v562 = vunpack.c.h.b16 %v118
    %v563 = vunpack.c.l.b16 %v119
    %v564 = vunpack.c.h.b16 %v119
    %v565 = vunpack.c.l.b16 %v120
    %v566 = vunpack.c.h.b16 %v120
    %v567 = vunpack.c.l.b16 %v121
    %v568 = vunpack.c.h.b16 %v121
    %v569 = vunpack.c.l.b16 %v122
    %v570 = vunpack.c.h.b16 %v122
    %v571 = vunpack.c.l.b16 %v123
    %v572 = vunpack.c.h.b16 %v123
    %v573 = vunpack.c.l.b16 %v124
    %v574 = vunpack.c.h.b16 %v124
    %v575 = vunpack.c.l.b16 %v125
    %v576 = vunpack.c.h.b16 %v125
    %v577 = vunpack.c.l.b16 %v126
    %v578 = vunpack.c.h.b16 %v126
    %v579 = vunpack.c.l.b16 %v127
    %v580 = vunpack.c.h.b16 %v127
    %v581 = vunpack.c.l.b16 %v128
    %v582 = vunpack.c.h.b16 %v128
    %v583 = vunpack.c.l.b16 %v129
    %v584 = vunpack.c.h.b16 %v129
    %v585 = vunpack.c.l.b16 %v130
    %v586 = vunpack.c.h.b16 %v130
    %v587 = vunpack.c.l.b16 %v131
    %v588 = vunpack.c.h.b16 %v131
    %v589 = vunpack.c.l.b16 %v132
    %v590 = vunpack.c.h.b16 %v132
    %v591 = vunpack.c.l.b16 %v133
    %v592 = vunpack.c.h.b16 %v133
    %v593 = vunpack.c.l.b16 %v134
    %v594 = vunpack.c.h.b16 %v134
    %v595 = vunpack.c.l.b16 %v135
    %v596 = vunpack.c.h.b16 %v135
    %v597 = vunpack.c.l.b16 %v136
    %v598 = vunpack.c.h.b16 %v136
    %v599 = vunpack.c.l.b16 %v137
    %v600 = vunpack.c.h.b16 %v137
    %v601 = vunpack.c.l.b16 %v138
    %v602 = vunpack.c.h.b16 %v138
    %v603 = vunpack.c.l.b16 %v139
    %v604 = vunpack.c.h.b16 %v139
    %v605 = vunpack.c.l.b16 %v140
    %v606 = vunpack.c.h.b16 %v140
    %v607 = vunpack.c.l.b16 %v141
    %v608 = vunpack.c.h.b16 %v141
    %v609 = vunpack.c.l.b16 %v142
    %v610 = vunpack.c.h.b16 %v142
    %v611 = vunpack.c.l.b16 %v143
    %v612 = vunpack.c.h.b16 %v143
    %v613 = vunpack.c.l.b16 %v144
    %v614 = vunpack.c.h.b16 %v144
    %v615 = vunpack.c.l.b16 %v145
    %v616 = vunpack.c.h.b16 %v145
    %v617 = vunpack.c.l.b16 %v146
    %v618 = vunpack.c.h.b16 %v146
    %v619 = vunpack.c.l.b16 %v147
    %v620 = vunpack.c.h.b16 %v147
    %v621 = vunpack.c.l.b16 %v148
    %v622 = vunpack.c.h.b16 %v148
    %v623 = vunpack.c.l.b16 %v149
    %v624 = vunpack.c.h.b16 %v149
    %v625 = vunpack.c.l.b16 %v150
    %v626 = vunpack.c.h.b16 %v150
    %v627 = vunpack.c.l.b16 %v151
    %v628 = vunpack.c.h.b16 %v151
    %v629 = vunpack.c.l.b16 %v152
    %v630 = vunpack.c.h.b16 %v152
    %v631 = vunpack.c.l.b16 %v153
    %v632 = vunpack.c.h.b16 %v153
    %v633 = vunpack.c.l.b16 %v154
    %v634 = vunpack.c.h.b16 %v154
    %v635 = vunpack.c.l.b16 %v155
    %v636 = vunpack.c.h.b16 %v155
    %v637 = vunpack.c.l.b16 %v156
    %v638 = vunpack.c.h.b16 %v156
    %v639 = vunpack.c.l.b16 %v157
    %v640 = vunpack.c.h.b16 %v157
    %v641 = vunpack.c.l.b16 %v158
    %v642 = vunpack.c.h.b16 %v158
    %v643 = vunpack.c.l.b16 %v159
    %v644 = vunpack.c.h.b16 %v159
    %v645 = vunpack.c.l.b16 %v160
    %v646 = vunpack.c.h.b16 %v160
    %v647 = vunpack.c.l.b16 %v161
    %v648 = vunpack.c.h.b16 %v161
    %v649 = vunpack.c.l.b16 %v162
    %v650 = vunpack.c.h.b16 %v162
    %v651 = vunpack.c.l.b16 %v163
    %v652 = vunpack.c.h.b16 %v163
    %v653 = vunpack.c.l.b16 %v164
    %v654 = vunpack.c.h.b16 %v164
    %v655 = vunpack.c.l.b16 %v165
    %v656 = vunpack.c.h.b16 %v165
    %v657 = vunpack.c.l.b16 %v166
    %v658 = vunpack.c.h.b16 %v166
    %v659 = vunpack.c.l.b16 %v167
    %v660 = vunpack.c.h.b16 %v167
    %v661 = vunpack.c.l.b16 %v168
    %v662 = vunpack.c.h.b16 %v168
    %v663 = vunpack.c.l.b16 %v169
    %v664 = vunpack.c.h.b16 %v169
    %v665 = vunpack.c.l.b16 %v170
    %v666 = vunpack.c.h.b16 %v170
    %v667 = vunpack.c.l.b16 %v171
    %v668 = vunpack.c.h.b16 %v171
    %v669 = vunpack.c.l.b16 %v172
    %v670 = vunpack.c.h.b16 %v172
    %v671 = vunpack.c.l.b16 %v173
    %v672 = vunpack.c.h.b16 %v173
    %v673 = vunpack.c.l.b16 %v174
    %v674 = vunpack.c.h.b16 %v174
    %v675 = vunpack.c.l.b16 %v175
    %v676 = vunpack.c.h.b16 %v175
    %v677 = vunpack.c.l.b16 %v176
    %v678 = vunpack.c.h.b16 %v176
    %v679 = vunpack.c.l.b16 %v177
    %v680 = vunpack.c.h.b16 %v177
    %v681 = vunpack.c.l.b16 %v178
    %v682 = vunpack.c.h.b16 %v178
    %v683 = vunpack.c.l.b16 %v179
    %v684 = vunpack.c.h.b16 %v179
    %v685 = vunpack.c.l.b16 %v180
    %v686 = vunpack.c.h.b16 %v180
    %v687 = vunpack.c.l.b16 %v181
    %v688 = vunpack.c.h.b16 %v181
    %v689 = vunpack.c.l.b16 %v182
    %v690 = vunpack.c.h.b16 %v182
    %v691 = vunpack.c.l.b16 %v183
    %v692 = vunpack.c.h.b16 %v183
    %v693 = vunpack.c.l.b16 %v184
    %v694 = vunpack.c.h.b16 %v184
    %v695 = vunpack.c.l.b16 %v185
    %v696 = vunpack.c.h.b16 %v185
    %v697 = vunpack.c.l.b16 %v186
    %v698 = vunpack.c.h.b16 %v186
    %v699 = vunpack.c.l.b16 %v187
    %v700 = vunpack.c.h.b16 %v187
    %v701 = vunpack.c.l.b16 %v188
    %v702 = vunpack.c.h.b16 %v188
    %v703 = vunpack.c.l.b16 %v189
    %v704 = vunpack.c.h.b16 %v189
    %v705 = vunpack.c.l.b16 %v190
    %v706 = vunpack.c.h.b16 %v190
    %v707 = vunpack.c.l.b16 %v191
    %v708 = vunpack.c.h.b16 %v191
    %v709 = vunpack.c.l.b16 %v192
    %v710 = vunpack.c.h.b16 %v192
    %v711 = vunpack.c.l.b16 %v193
    %v712 = vunpack.c.h.b16 %v193
    %v713 = vunpack.c.l.b16 %v194
    %v714 = vunpack.c.h.b16 %v194
    %v715 = vunpack.c.l.b16 %v195
    %v716 = vunpack.c.h.b16 %v195
    %v717 = vunpack.c.l.b16 %v196
    %v718 = vunpack.c.h.b16 %v196
    %v719 = vunpack.c.l.b16 %v197
    %v720 = vunpack.c.h.b16 %v197
    %v721 = vunpack.c.l.b16 %v198
    %v722 = vunpack.c.h.b16 %v198
    %v723 = vunpack.c.l.b16 %v199
    %v724 = vunpack.c.h.b16 %v199
    %v725 = vunpack.c.l.b16 %v200
    %v726 = vunpack.c.h.b16 %v200
    %v727 = vunpack.c.l.b16 %v201
    %v728 = vunpack.c.h.b16 %v201
    %v729 = vunpack.c.l.b16 %v202
    %v730 = vunpack.c.h.b16 %v202
    %v731 = vunpack.c.l.b16 %v203
    %v732 = vunpack.c.h.b16 %v203
    %v733 = vunpack.c.l.b16 %v204
    %v734 = vunpack.c.h.b16 %v204
    %v735 = vunpack.c.l.b16 %v205
    %v736 = vunpack.c.h.b16 %v205
    %v737 = vunpack.c.l.b16 %v206
    %v738 = vunpack.c.h.b16 %v206
    %v739 = vunpack.c.l.b16 %v207
    %v740 = vunpack.c.h.b16 %v207
    %v741 = vunpack.c.l.b16 %v208
    %v742 = vunpack.c.h.b16 %v208
    %v743 = vunpack.c.l.b16 %v209
    %v744 = vunpack.c.h.b16 %v209
    %v745 = vunpack.c.l.b16 %v210
    %v746 = vunpack.c.h.b16 %v210
    %v747 = vunpack.c.l.b16 %v211
    %v748 = vunpack.c.h.b16 %v211
    %v749 = vunpack.c.l.b16 %v212
    %v750 = vunpack.c.h.b16 %v212
    %v751 = vunpack.c.l.b16 %v213
    %v752 = vunpack.c.h.b16 %v213
    %v753 = vunpack.c.l.b16 %v214
    %v754 = vunpack.c.h.b16 %v214
    %v755 = vunpack.c.l.b16 %v215
    %v756 = vunpack.c.h.b16 %v215
    %v757 = vunpack.c.l.b16 %v216
    %v758 = vunpack.c.h.b16 %v216
    %v759 = vunpack.c.l.b16 %v217
    %v760 = vunpack.c.h.b16 %v217
    %v761 = vunpack.c.l.b16 %v218
    %v762 = vunpack.c.h.b16 %v218
    %v763 = vunpack.c.l.b16 %v219
    %v764 = vunpack.c.h.b16 %v219
    %v765 = vunpack.c.l.b16 %v220
    %v766 = vunpack.c.h.b16 %v220
    %v767 = vunpack.c.l.b16 %v221
    %v768 = vunpack.c.h.b16 %v221
    %v769 = vunpack.c.l.b16 %v222
    %v770 = vunpack.c.h.b16 %v222
    %v771 = vunpack.c.l.b16 %v223
    %v772 = vunpack.c.h.b16 %v223
    %v773 = vunpack.c.l.b16 %v224
    %v774 = vunpack.c.h.b16 %v224
    %v775 = vunpack.c.l.b16 %v225
    %v776 = vunpack.c.h.b16 %v225
    %v777 = vunpack.c.l.b16 %v226
    %v778 = vunpack.c.h.b16 %v226
    %v779 = vunpack.c.l.b16 %v227
    %v780 = vunpack.c.h.b16 %v227
    %v781 = vunpack.c.l.b16 %v228
    %v782 = vunpack.c.h.b16 %v228
    %v783 = vunpack.c.l.b16 %v229
    %v784 = vunpack.c.h.b16 %v229
    %v785 = vunpack.c.l.b16 %v230
    %v786 = vunpack.c.h.b16 %v230
    %v787 = vunpack.c.l.b16 %v231
    %v788 = vunpack.c.h.b16 %v231
    %v789 = vunpack.c.l.b16 %v232
    %v790 = vunpack.c.h.b16 %v232
    %v791 = vunpack.c.l.b16 %v233
    %v792 = vunpack.c.h.b16 %v233
    %v793 = vunpack.c.l.b16 %v234
    %v794 = vunpack.c.h.b16 %v234
    %v795 = vunpack.c.l.b16 %v235
    %v796 = vunpack.c.h.b16 %v235
    %v797 = vunpack.c.l.b16 %v236
    %v798 = vunpack.c.h.b16 %v236
    %v799 = vunpack.c.l.b16 %v237
    %v800 = vunpack.c.h.b16 %v237
    %v801 = vunpack.c.l.b16 %v238
    %v802 = vunpack.c.h.b16 %v238
    %v803 = vunpack.c.l.b16 %v239
    %v804 = vunpack.c.h.b16 %v239
    %v805 = vunpack.c.l.b16 %v240
    %v806 = vunpack.c.h.b16 %v240
    %v807 = vunpack.c.l.b16 %v241
    %v808 = vunpack.c.h.b16 %v241
    %v809 = vunpack.c.l.b16 %v242
    %v810 = vunpack.c.h.b16 %v242
    %v811 = vunpack.c.l.b16 %v243
    %v812 = vunpack.c.h.b16 %v243
    %v813 = vunpack.c.l.b16 %v244
    %v814 = vunpack.c.h.b16 %v244
    %v815 = vunpack.c.l.b16 %v245
    %v816 = vunpack.c.h.b16 %v245
    %v817 = vunpack.c.l.b16 %v246
    %v818 = vunpack.c.h.b16 %v246
    %v819 = vunpack.c.l.b16 %v247
    %v820 = vunpack.c.h.b16 %v247
    %v821 = vunpack.c.l.b16 %v248
    %v822 = vunpack.c.h.b16 %v248
    %v823 = vunpack.c.l.b16 %v249
    %v824 = vunpack.c.h.b16 %v249
    %v825 = vunpack.c.l.b16 %v250
    %v826 = vunpack.c.h.b16 %v250
    %v827 = vunpack.c.l.b16 %v251
    %v828 = vunpack.c.h.b16 %v251
    %v829 = vunpack.c.l.b16 %v252
    %v830 = vunpack.c.h.b16 %v252
    %v831 = vunpack.c.l.b16 %v253
    %v832 = vunpack.c.h.b16 %v253
    %v833 = vunpack.c.l.b16 %v254
    %v834 = vunpack.c.h.b16 %v254
    %v835 = vunpack.c.l.b16 %v255
    %v836 = vunpack.c.h.b16 %v255
    %v837 = vunpack.c.l.b16 %v256
    %v838 = vunpack.c.h.b16 %v256
    %v839 = vunpack.c.l.b16 %v257
    %v840 = vunpack.c.h.b16 %v257
    %v841 = vunpack.c.l.b16 %v258
    %v842 = vunpack.c.h.b16 %v258
    %v843 = vunpack.c.l.b16 %v259
    %v844 = vunpack.c.h.b16 %v259
    %v845 = vunpack.c.l.b16 %v260
    %v846 = vunpack.c.h.b16 %v260
    %v847 = vunpack.c.l.b16 %v261
    %v848 = vunpack.c.h.b16 %v261
    %v849 = vunpack.c.l.b16 %v262
    %v850 = vunpack.c.h.b16 %v262
    %v851 = vunpack.c.l.b16 %v263
    %v852 = vunpack.c.h.b16 %v263
    %v853 = vunpack.c.l.b16 %v264
    %v854 = vunpack.c.h.b16 %v264
    %v855 = vunpack.c.l.b16 %v265
    %v856 = vunpack.c.h.b16 %v265
    %v857 = vunpack.c.l.b16 %v266
    %v858 = vunpack.c.h.b16 %v266
    %v859 = vunpack.c.l.b16 %v267
    %v860 = vunpack.c.h.b16 %v267
    %v861 = vunpack.c.l.b16 %v268
    %v862 = vunpack.c.h.b16 %v268
    %v863 = vunpack.c.l.b16 %v269
    %v864 = vunpack.c.h.b16 %v269
    %v865 = vunpack.c.l.b16 %v270
    %v866 = vunpack.c.h.b16 %v270
    %v867 = vunpack.c.l.b16 %v271
    %v868 = vunpack.c.h.b16 %v271
    %v869 = vunpack.c.l.b16 %v272
    %v870 = vunpack.c.h.b16 %v272
    %v871 = vunpack.c.l.b16 %v273
    %v872 = vunpack.c.h.b16 %v273
    %v873 = vunpack.c.l.b16 %v274
    %v874 = vunpack.c.h.b16 %v274
    %v875 = vunpack.c.l.b16 %v275
    %v876 = vunpack.c.h.b16 %v275
    %v877 = vunpack.c.l.b16 %v276
    %v878 = vunpack.c.h.b16 %v276
    %v879 = vunpack.c.l.b16 %v277
    %v880 = vunpack.c.h.b16 %v277
    %v881 = vunpack.c.l.b16 %v278
    %v882 = vunpack.c.h.b16 %v278
    %v883 = vunpack.c.l.b16 %v279
    %v884 = vunpack.c.h.b16 %v279
    %v885 = vunpack.c.l.b16 %v280
    %v886 = vunpack.c.h.b16 %v280
    %v887 = vunpack.c.l.b16 %v281
    %v888 = vunpack.c.h.b16 %v281
    %v889 = vunpack.c.l.b16 %v282
    %v890 = vunpack.c.h.b16 %v282
    %v891 = vunpack.c.l.b16 %v283
    %v892 = vunpack.c.h.b16 %v283
    %v893 = vunpack.c.l.b16 %v284
    %v894 = vunpack.c.h.b16 %v284
    %v895 = vpack.c.b16 %v507, %v503
    %v896 = vpack.c.b16 %v508, %v504
    %v897 = vpack.c.b16 %v509, %v505
    %v898 = vpack.c.b16 %v510, %v506
    %v899 = vpack.c.b16 %v515, %v511
    %v900 = vpack.c.b16 %v516, %v512
    %v901 = vpack.c.b16 %v517, %v513
    %v902 = vpack.c.b16 %v518, %v514
    %v903 = vpack.c.b16 %v523, %v519
    %v904 = vpack.c.b16 %v524, %v520
    %v905 = vpack.c.b16 %v525, %v521
    %v906 = vpack.c.b16 %v526, %v522
    %v907 = vpack.c.b16 %v531, %v527
    %v908 = vpack.c.b16 %v532, %v528
    %v909 = vpack.c.b16 %v533, %v529
    %v910 = vpack.c.b16 %v534, %v530
    %v911 = vpack.c.b16 %v539, %v535
    %v912 = vpack.c.b16 %v540, %v536
    %v913 = vpack.c.b16 %v541, %v537
    %v914 = vpack.c.b16 %v542, %v538
    %v915 = vpack.c.b16 %v547, %v543
    %v916 = vpack.c.b16 %v548, %v544
    %v917 = vpack.c.b16 %v549, %v545
    %v918 = vpack.c.b16 %v550, %v546
    %v919 = vpack.c.b16 %v555, %v551
    %v920 = vpack.c.b16 %v556, %v552
    %v921 = vpack.c.b16 %v557, %v553
    %v922 = vpack.c.b16 %v558, %v554
    %v923 = vpack.c.b16 %v563, %v559
    %v924 = vpack.c.b16 %v564, %v560
    %v925 = vpack.c.b16 %v565, %v561
    %v926 = vpack.c.b16 %v566, %v562
    %v927 = vpack.c.b16 %v571, %v567
    %v928 = vpack.c.b16 %v572, %v568
    %v929 = vpack.c.b16 %v573, %v569
    %v930 = vpack.c.b16 %v574, %v570
    %v931 = vpack.c.b16 %v579, %v575
    %v932 = vpack.c.b16 %v580, %v576
    %v933 = vpack.c.b16 %v581, %v577
    %v934 = vpack.c.b16 %v582, %v578
    %v935 = vpack.c.b16 %v587, %v583
    %v936 = vpack.c.b16 %v588, %v584
    %v937 = vpack.c.b16 %v589, %v585
    %v938 = vpack.c.b16 %v590, %v586
    %v939 = vpack.c.b16 %v595, %v591
    %v940 = vpack.c.b16 %v596, %v592
    %v941 = vpack.c.b16 %v597, %v593
    %v942 = vpack.c.b16 %v598, %v594
    %v943 = vpack.c.b16 %v603, %v599
    %v944 = vpack.c.b16 %v604, %v600
    %v945 = vpack.c.b16 %v605, %v601
    %v946 = vpack.c.b16 %v606, %v602
    %v947 = vpack.c.b16 %v611, %v607
    %v948 = vpack.c.b16 %v612, %v608
    %v949 = vpack.c.b16 %v613, %v609
    %v950 = vpack.c.b16 %v614, %v610
    %v951 = vpack.c.b16 %v619, %v615
    %v952 = vpack.c.b16 %v620, %v616
    %v953 = vpack.c.b16 %v621, %v617
    %v954 = vpack.c.b16 %v622, %v618
    %v955 = vpack.c.b16 %v627, %v623
    %v956 = vpack.c.b16 %v628, %v624
    %v957 = vpack.c.b16 %v629, %v625
    %v958 = vpack.c.b16 %v630, %v626
    %v959 = vpack.c.b16 %v635, %v631
    %v960 = vpack.c.b16 %v636, %v632
    %v961 = vpack.c.b16 %v637, %v633
    %v962 = vpack.c.b16 %v638, %v634
    %v963 = vpack.c.b16 %v643, %v639
    %v964 = vpack.c.b16 %v644, %v640
    %v965 = vpack.c.b16 %v645, %v641
    %v966 = vpack.c.b16 %v646, %v642
    %v967 = vpack.c.b16 %v651, %v647
    %v968 = vpack.c.b16 %v652, %v648
    %v969 = vpack.c.b16 %v653, %v649
    %v970 = vpack.c.b16 %v654, %v650
    %v971 = vpack.c.b16 %v659, %v655
    %v972 = vpack.c.b16 %v660, %v656
    %v973 = vpack.c.b16 %v661, %v657
    %v974 = vpack.c.b16 %v662, %v658
    %v975 = vpack.c.b16 %v667, %v663
    %v976 = vpack.c.b16 %v668, %v664
    %v977 = vpack.c.b16 %v669, %v665
    %v978 = vpack.c.b16 %v670, %v666
    %v979 = vpack.c.b16 %v675, %v671
    %v980 = vpack.c.b16 %v676, %v672
    %v981 = vpack.c.b16 %v677, %v673
    %v982 = vpack.c.b16 %v678, %v674
    %v983 = vpack.c.b16 %v683, %v679
    %v984 = vpack.c.b16 %v684, %v680
    %v985 = vpack.c.b16 %v685, %v681
    %v986 = vpack.c.b16 %v686, %v682
    %v987 = vpack.c.b16 %v691, %v687
    %v988 = vpack.c.b16 %v692, %v688
    %v989 = vpack.c.b16 %v693, %v689
    %v990 = vpack.c.b16 %v694, %v690
    %v991 = vpack.c.b16 %v699, %v695
    %v992 = vpack.c.b16 %v700, %v696
    %v993 = vpack.c.b16 %v701, %v697
    %v994 = vpack.c.b16 %v702, %v698
    %v995 = vpack.c.b16 %v707, %v703
    %v996 = vpack.c.b16 %v708, %v704
    %v997 = vpack.c.b16 %v709, %v705
    %v998 = vpack.c.b16 %v710, %v706
    %v999 = vpack.c.b16 %v715, %v711
    %v1000 = vpack.c.b16 %v716, %v712
    %v1001 = vpack.c.b16 %v717, %v713
    %v1002 = vpack.c.b16 %v718, %v714
    %v1003 = vpack.c.b16 %v723, %v719
    %v1004 = vpack.c.b16 %v724, %v720
    %v1005 = vpack.c.b16 %v725, %v721
    %v1006 = vpack.c.b16 %v726, %v722
    %v1007 = vpack.c.b16 %v731, %v727
    %v1008 = vpack.c.b16 %v732, %v728
    %v1009 = vpack.c.b16 %v733, %v729
    %v1010 = vpack.c.b16 %v734, %v730
    %v1011 = vpack.c.b16 %v739, %v735
    %v1012 = vpack.c.b16 %v740, %v736
    %v1013 = vpack.c.b16 %v741, %v737
    %v1014 = vpack.c.b16 %v742, %v738
    %v1015 = vpack.c.b16 %v747, %v743
    %v1016 = vpack.c.b16 %v748, %v744
    %v1017 = vpack.c.b16 %v749, %v745
    %v1018 = vpack.c.b16 %v750, %v746
    %v1019 = vpack.c.b16 %v755, %v751
    %v1020 = vpack.c.b16 %v756, %v752
    %v1021 = vpack.c.b16 %v757, %v753
    %v1022 = vpack.c.b16 %v758, %v754
    %v1023 = vpack.c.b16 %v763, %v759
    %v1024 = vpack.c.b16 %v764, %v760
    %v1025 = vpack.c.b16 %v765, %v761
    %v1026 = vpack.c.b16 %v766, %v762
    %v1027 = vpack.c.b16 %v771, %v767
    %v1028 = vpack.c.b16 %v772, %v768
    %v1029 = vpack.c.b16 %v773, %v769
    %v1030 = vpack.c.b16 %v774, %v770
    %v1031 = vpack.c.b16 %v779, %v775
    %v1032 = vpack.c.b16 %v780, %v776
    %v1033 = vpack.c.b16 %v781, %v777
    %v1034 = vpack.c.b16 %v782, %v778
    %v1035 = vpack.c.b16 %v787, %v783
    %v1036 = vpack.c.b16 %v788, %v784
    %v1037 = vpack.c.b16 %v789, %v785
    %v1038 = vpack.c.b16 %v790, %v786
    %v1039 = vpack.c.b16 %v795, %v791
    %v1040 = vpack.c.b16 %v796, %v792
    %v1041 = vpack.c.b16 %v797, %v793
    %v1042 = vpack.c.b16 %v798, %v794
    %v1043 = vpack.c.b16 %v803, %v799
    %v1044 = vpack.c.b16 %v804, %v800
    %v1045 = vpack.c.b16 %v805, %v801
    %v1046 = vpack.c.b16 %v806, %v802
    %v1047 = vpack.c.b16 %v811, %v807
    %v1048 = vpack.c.b16 %v812, %v808
    %v1049 = vpack.c.b16 %v813, %v809
    %v1050 = vpack.c.b16 %v814, %v810
    %v1051 = vpack.c.b16 %v819, %v815
    %v1052 = vpack.c.b16 %v820, %v816
    %v1053 = vpack.c.b16 %v821, %v817
    %v1054 = vpack.c.b16 %v822, %v818
    %v1055 = vpack.c.b16 %v827, %v823
    %v1056 = vpack.c.b16 %v828, %v824
    %v1057 = vpack.c.b16 %v829, %v825
    %v1058 = vpack.c.b16 %v830, %v826
    %v1059 = vpack.c.b16 %v835, %v831
    %v1060 = vpack.c.b16 %v836, %v832
    %v1061 = vpack.c.b16 %v837, %v833
    %v1062 = vpack.c.b16 %v838, %v834
    %v1063 = vpack.c.b16 %v843, %v839
    %v1064 = vpack.c.b16 %v844, %v840
    %v1065 = vpack.c.b16 %v845, %v841
    %v1066 = vpack.c.b16 %v846, %v842
    %v1067 = vpack.c.b16 %v851, %v847
    %v1068 = vpack.c.b16 %v852, %v848
    %v1069 = vpack.c.b16 %v853, %v849
    %v1070 = vpack.c.b16 %v854, %v850
    %v1071 = vpack.c.b16 %v859, %v855
    %v1072 = vpack.c.b16 %v860, %v856
    %v1073 = vpack.c.b16 %v861, %v857
    %v1074 = vpack.c.b16 %v862, %v858
    %v1075 = vpack.c.b16 %v867, %v863
    %v1076 = vpack.c.b16 %v868, %v864
    %v1077 = vpack.c.b16 %v869, %v865
    %v1078 = vpack.c.b16 %v870, %v866
    %v1079 = vpack.c.b16 %v875, %v871
    %v1080 = vpack.c.b16 %v876, %v872
    %v1081 = vpack.c.b16 %v877, %v873
    %v1082 = vpack.c.b16 %v878, %v874
    %v1083 = vpack.c.b16 %v883, %v879
    %v1084 = vpack.c.b16 %v884, %v880
    %v1085 = vpack.c.b16 %v885, %v881
    %v1086 = vpack.c.b16 %v886, %v882
    %v1087 = vpack.c.b16 %v891, %v887
    %v1088 = vpack.c.b16 %v892, %v888
    %v1089 = vpack.c.b16 %v893, %v889
    %v1090 = vpack.c.b16 %v894, %v890
    %vm1287 = vcmask 130048
    %v1289 = vsel %vm1287, %v88, 0
    %1291 = vmatprep.subr.bf16.mxu0 %v896
    %1292 = vmatpush1.bf16.msra.mxu0 %v895
    %1293 = vmatprep.subr.bf16.mxu0 %v900
    %1294 = vmatpush1.bf16.msra.mxu0 %v899
    %1295 = vmatprep.subr.bf16.mxu0 %v904
    %1296 = vmatpush1.bf16.msra.mxu0 %v903
    %1297 = vmatprep.subr.bf16.mxu0 %v908
    %1298 = vmatpush1.bf16.msra.mxu0 %v907
    %1299 = vmatprep.subr.bf16.mxu0 %v912
    %1300 = vmatpush1.bf16.msra.mxu0 %v911
    %1301 = vmatprep.subr.bf16.mxu0 %v916
    %1302 = vmatpush1.bf16.msra.mxu0 %v915
    %1303 = vmatprep.subr.bf16.mxu0 %v920
    %1304 = vmatpush1.bf16.msra.mxu0 %v919
    %1305 = vmatprep.subr.bf16.mxu0 %v924
    %1306 = vmatpush1.bf16.msra.mxu0 %v923
    %1307 = vmatprep.subr.bf16.mxu0 %v928
    %1308 = vmatpush1.bf16.msra.mxu0 %v927
    %1309 = vmatprep.subr.bf16.mxu0 %v932
    %1310 = vmatpush1.bf16.msra.mxu0 %v931
    %1311 = vmatprep.subr.bf16.mxu0 %v936
    %1312 = vmatpush1.bf16.msra.mxu0 %v935
    %1313 = vmatprep.subr.bf16.mxu0 %v940
    %1314 = vmatpush1.bf16.msra.mxu0 %v939
    %1315 = vmatprep.subr.bf16.mxu0 %v944
    %1316 = vmatpush1.bf16.msra.mxu0 %v943
    %1317 = vmatprep.subr.bf16.mxu0 %v948
    %1318 = vmatpush1.bf16.msra.mxu0 %v947
    %1319 = vmatprep.subr.bf16.mxu0 %v952
    %1320 = vmatpush1.bf16.msra.mxu0 %v951
    %1321 = vmatprep.subr.bf16.mxu0 %v956
    %1322 = vmatpush1.bf16.msra.mxu0 %v955
    %1323 = vmatprep.mubr.bf16.mxu0 %v83
    %1324 = vmatmul.mubr.bf16.gmra.mrb[0].mxu0 %v82
    %v1325 = vpop.f32.mrb[0].mxu0
    %v1326 = vadd.f32 %v290, %v1325
    %v1327 = vpop.f32.mrb[0].mxu0
    %v1328 = vadd.f32 %v294, %v1327
    %v1329 = vpop.f32.mrb[0].mxu0
    %v1330 = vadd.f32 %v290, %v1329
    %v1331 = vpop.f32.mrb[0].mxu0
    %v1332 = vadd.f32 %v294, %v1331
    %1333 = vdwg.mxu0
    %1334 = vmatprep.subr.bf16.mxu0 %v960
    %1335 = vmatpush1.bf16.msra.mxu0 %v959
    %1336 = vmatprep.subr.bf16.mxu0 %v964
    %1337 = vmatpush1.bf16.msra.mxu0 %v963
    %1338 = vmatprep.subr.bf16.mxu0 %v968
    %1339 = vmatpush1.bf16.msra.mxu0 %v967
    %1340 = vmatprep.subr.bf16.mxu0 %v972
    %1341 = vmatpush1.bf16.msra.mxu0 %v971
    %1342 = vmatprep.subr.bf16.mxu0 %v976
    %1343 = vmatpush1.bf16.msra.mxu0 %v975
    %1344 = vmatprep.subr.bf16.mxu0 %v980
    %1345 = vmatpush1.bf16.msra.mxu0 %v979
    %1346 = vmatprep.subr.bf16.mxu0 %v984
    %1347 = vmatpush1.bf16.msra.mxu0 %v983
    %1348 = vmatprep.subr.bf16.mxu0 %v988
    %1349 = vmatpush1.bf16.msra.mxu0 %v987
    %1350 = vmatprep.subr.bf16.mxu0 %v992
    %1351 = vmatpush1.bf16.msra.mxu0 %v991
    %1352 = vmatprep.subr.bf16.mxu0 %v996
    %1353 = vmatpush1.bf16.msra.mxu0 %v995
    %1354 = vmatprep.subr.bf16.mxu0 %v1000
    %1355 = vmatpush1.bf16.msra.mxu0 %v999
    %1356 = vmatprep.subr.bf16.mxu0 %v1004
    %1357 = vmatpush1.bf16.msra.mxu0 %v1003
    %1358 = vmatprep.subr.bf16.mxu0 %v1008
    %1359 = vmatpush1.bf16.msra.mxu0 %v1007
    %1360 = vmatprep.subr.bf16.mxu0 %v1012
    %1361 = vmatpush1.bf16.msra.mxu0 %v1011
    %1362 = vmatprep.subr.bf16.mxu0 %v1016
    %1363 = vmatpush1.bf16.msra.mxu0 %v1015
    %1364 = vmatprep.subr.bf16.mxu0 %v1020
    %1365 = vmatpush1.bf16.msra.mxu0 %v1019
    %1366 = vmatprep.mubr.bf16.mxu0 %v85
    %1367 = vmatmul.mubr.bf16.gmra.mrb[0].mxu0 %v84
    %v1368 = vpop.f32.mrb[0].mxu0
    %v1369 = vadd.f32 %v1326, %v1368
    %v1370 = vpop.f32.mrb[0].mxu0
    %v1371 = vadd.f32 %v1328, %v1370
    %v1372 = vpop.f32.mrb[0].mxu0
    %v1373 = vadd.f32 %v1330, %v1372
    %v1374 = vpop.f32.mrb[0].mxu0
    %v1375 = vadd.f32 %v1332, %v1374
    %1376 = vdwg.mxu0
    %1377 = vmatprep.subr.bf16.mxu0 %v1024
    %1378 = vmatpush1.bf16.msra.mxu0 %v1023
    %1379 = vmatprep.subr.bf16.mxu0 %v1028
    %1380 = vmatpush1.bf16.msra.mxu0 %v1027
    %1381 = vmatprep.subr.bf16.mxu0 %v1032
    %1382 = vmatpush1.bf16.msra.mxu0 %v1031
    %1383 = vmatprep.subr.bf16.mxu0 %v1036
    %1384 = vmatpush1.bf16.msra.mxu0 %v1035
    %1385 = vmatprep.subr.bf16.mxu0 %v1040
    %1386 = vmatpush1.bf16.msra.mxu0 %v1039
    %1387 = vmatprep.subr.bf16.mxu0 %v1044
    %1388 = vmatpush1.bf16.msra.mxu0 %v1043
    %1389 = vmatprep.subr.bf16.mxu0 %v1048
    %1390 = vmatpush1.bf16.msra.mxu0 %v1047
    %1391 = vmatprep.subr.bf16.mxu0 %v1052
    %1392 = vmatpush1.bf16.msra.mxu0 %v1051
    %1393 = vmatprep.subr.bf16.mxu0 %v1056
    %1394 = vmatpush1.bf16.msra.mxu0 %v1055
    %1395 = vmatprep.subr.bf16.mxu0 %v1060
    %1396 = vmatpush1.bf16.msra.mxu0 %v1059
    %1397 = vmatprep.subr.bf16.mxu0 %v1064
    %1398 = vmatpush1.bf16.msra.mxu0 %v1063
    %1399 = vmatprep.subr.bf16.mxu0 %v1068
    %1400 = vmatpush1.bf16.msra.mxu0 %v1067
    %1401 = vmatprep.subr.bf16.mxu0 %v1072
    %1402 = vmatpush1.bf16.msra.mxu0 %v1071
    %1403 = vmatprep.subr.bf16.mxu0 %v1076
    %1404 = vmatpush1.bf16.msra.mxu0 %v1075
    %1405 = vmatprep.subr.bf16.mxu0 %v1080
    %1406 = vmatpush1.bf16.msra.mxu0 %v1079
    %1407 = vmatprep.subr.bf16.mxu0 %v1084
    %1408 = vmatpush1.bf16.msra.mxu0 %v1083
    %1409 = vmatprep.mubr.bf16.mxu0 %v87
    %1410 = vmatmul.mubr.bf16.gmra.mrb[0].mxu0 %v86
    %v1411 = vpop.f32.mrb[0].mxu0
    %v1412 = vadd.f32 %v1369, %v1411
    %v1413 = vpop.f32.mrb[0].mxu0
    %v1414 = vadd.f32 %v1371, %v1413
    %v1415 = vpop.f32.mrb[0].mxu0
    %v1416 = vadd.f32 %v1373, %v1415
    %v1417 = vpop.f32.mrb[0].mxu0
    %v1418 = vadd.f32 %v1375, %v1417
    %1419 = vdwg.mxu0
    %1420 = vmatprep.subr.bf16.mxu0 %v1088
    %1421 = vmatpush1.bf16.msra.mxu0 %v1087
    %1422 = vmatprep.subr.bf16.mxu0 0
    %1423 = vmatpush1.bf16.msra.mxu0 0
    %1424 = vmatprep.subr.bf16.mxu0 0
    %1425 = vmatpush1.bf16.msra.mxu0 0
    %1426 = vmatprep.subr.bf16.mxu0 0
    %1427 = vmatpush1.bf16.msra.mxu0 0
    %1428 = vmatprep.subr.bf16.mxu0 0
    %1429 = vmatpush1.bf16.msra.mxu0 0
    %1430 = vmatprep.subr.bf16.mxu0 0
    %1431 = vmatpush1.bf16.msra.mxu0 0
    %1432 = vmatprep.subr.bf16.mxu0 0
    %1433 = vmatpush1.bf16.msra.mxu0 0
    %1434 = vmatprep.subr.bf16.mxu0 0
    %1435 = vmatpush1.bf16.msra.mxu0 0
    %1436 = vmatprep.subr.bf16.mxu0 0
    %1437 = vmatpush1.bf16.msra.mxu0 0
    %1438 = vmatprep.subr.bf16.mxu0 0
    %1439 = vmatpush1.bf16.msra.mxu0 0
    %1440 = vmatprep.subr.bf16.mxu0 0
    %1441 = vmatpush1.bf16.msra.mxu0 0
    %1442 = vmatprep.subr.bf16.mxu0 0
    %1443 = vmatpush1.bf16.msra.mxu0 0
    %1444 = vmatprep.subr.bf16.mxu0 0
    %1445 = vmatpush1.bf16.msra.mxu0 0
    %1446 = vmatprep.subr.bf16.mxu0 0
    %1447 = vmatpush1.bf16.msra.mxu0 0
    %1448 = vmatprep.subr.bf16.mxu0 0
    %1449 = vmatpush1.bf16.msra.mxu0 0
    %1450 = vmatprep.subr.bf16.mxu0 0
    %1451 = vmatpush1.bf16.msra.mxu0 0
    %1452 = vmatprep.mubr.bf16.mxu0 0
    %1453 = vmatmul.mubr.bf16.gmra.mrb[0].mxu0 %v1289
    %v1454 = vpop.f32.mrb[0].mxu0
    %v1455 = vadd.f32 %v1412, %v1454
    %v1456 = vpop.f32.mrb[0].mxu0
    %v1457 = vadd.f32 %v1414, %v1456
    %v1458 = vpop.f32.mrb[0].mxu0
    %v1459 = vadd.f32 %v1416, %v1458
    %v1460 = vpop.f32.mrb[0].mxu0
    %v1461 = vadd.f32 %v1418, %v1460
    %1462 = vdwg.mxu0
    %1463 = vmatprep.subr.bf16.mxu0 %v898
    %1464 = vmatpush1.bf16.msra.mxu0 %v897
    %1465 = vmatprep.subr.bf16.mxu0 %v902
    %1466 = vmatpush1.bf16.msra.mxu0 %v901
    %1467 = vmatprep.subr.bf16.mxu0 %v906
    %1468 = vmatpush1.bf16.msra.mxu0 %v905
    %1469 = vmatprep.subr.bf16.mxu0 %v910
    %1470 = vmatpush1.bf16.msra.mxu0 %v909
    %1471 = vmatprep.subr.bf16.mxu0 %v914
    %1472 = vmatpush1.bf16.msra.mxu0 %v913
    %1473 = vmatprep.subr.bf16.mxu0 %v918
    %1474 = vmatpush1.bf16.msra.mxu0 %v917
    %1475 = vmatprep.subr.bf16.mxu0 %v922
    %1476 = vmatpush1.bf16.msra.mxu0 %v921
    %1477 = vmatprep.subr.bf16.mxu0 %v926
    %1478 = vmatpush1.bf16.msra.mxu0 %v925
    %1479 = vmatprep.subr.bf16.mxu0 %v930
    %1480 = vmatpush1.bf16.msra.mxu0 %v929
    %1481 = vmatprep.subr.bf16.mxu0 %v934
    %1482 = vmatpush1.bf16.msra.mxu0 %v933
    %1483 = vmatprep.subr.bf16.mxu0 %v938
    %1484 = vmatpush1.bf16.msra.mxu0 %v937
    %1485 = vmatprep.subr.bf16.mxu0 %v942
    %1486 = vmatpush1.bf16.msra.mxu0 %v941
    %1487 = vmatprep.subr.bf16.mxu0 %v946
    %1488 = vmatpush1.bf16.msra.mxu0 %v945
    %1489 = vmatprep.subr.bf16.mxu0 %v950
    %1490 = vmatpush1.bf16.msra.mxu0 %v949
    %1491 = vmatprep.subr.bf16.mxu0 %v954
    %1492 = vmatpush1.bf16.msra.mxu0 %v953
    %1493 = vmatprep.subr.bf16.mxu0 %v958
    %1494 = vmatpush1.bf16.msra.mxu0 %v957
    %1495 = vmatprep.mubr.bf16.mxu0 %v83
    %1496 = vmatmul.mubr.bf16.gmra.mrb[0].mxu0 %v82
    %v1497 = vpop.f32.mrb[0].mxu0
    %v1498 = vadd.f32 %v298, %v1497
    %v1499 = vpop.f32.mrb[0].mxu0
    %v1500 = vadd.f32 %v302, %v1499
    %v1501 = vpop.f32.mrb[0].mxu0
    %v1502 = vadd.f32 %v298, %v1501
    %v1503 = vpop.f32.mrb[0].mxu0
    %v1504 = vadd.f32 %v302, %v1503
    %1505 = vdwg.mxu0
    %1506 = vmatprep.subr.bf16.mxu0 %v962
    %1507 = vmatpush1.bf16.msra.mxu0 %v961
    %1508 = vmatprep.subr.bf16.mxu0 %v966
    %1509 = vmatpush1.bf16.msra.mxu0 %v965
    %1510 = vmatprep.subr.bf16.mxu0 %v970
    %1511 = vmatpush1.bf16.msra.mxu0 %v969
    %1512 = vmatprep.subr.bf16.mxu0 %v974
    %1513 = vmatpush1.bf16.msra.mxu0 %v973
    %1514 = vmatprep.subr.bf16.mxu0 %v978
    %1515 = vmatpush1.bf16.msra.mxu0 %v977
    %1516 = vmatprep.subr.bf16.mxu0 %v982
    %1517 = vmatpush1.bf16.msra.mxu0 %v981
    %1518 = vmatprep.subr.bf16.mxu0 %v986
    %1519 = vmatpush1.bf16.msra.mxu0 %v985
    %1520 = vmatprep.subr.bf16.mxu0 %v990
    %1521 = vmatpush1.bf16.msra.mxu0 %v989
    %1522 = vmatprep.subr.bf16.mxu0 %v994
    %1523 = vmatpush1.bf16.msra.mxu0 %v993
    %1524 = vmatprep.subr.bf16.mxu0 %v998
    %1525 = vmatpush1.bf16.msra.mxu0 %v997
    %1526 = vmatprep.subr.bf16.mxu0 %v1002
    %1527 = vmatpush1.bf16.msra.mxu0 %v1001
    %1528 = vmatprep.subr.bf16.mxu0 %v1006
    %1529 = vmatpush1.bf16.msra.mxu0 %v1005
    %1530 = vmatprep.subr.bf16.mxu0 %v1010
    %1531 = vmatpush1.bf16.msra.mxu0 %v1009
    %1532 = vmatprep.subr.bf16.mxu0 %v1014
    %1533 = vmatpush1.bf16.msra.mxu0 %v1013
    %1534 = vmatprep.subr.bf16.mxu0 %v1018
    %1535 = vmatpush1.bf16.msra.mxu0 %v1017
    %1536 = vmatprep.subr.bf16.mxu0 %v1022
    %1537 = vmatpush1.bf16.msra.mxu0 %v1021
    %1538 = vmatprep.mubr.bf16.mxu0 %v85
    %1539 = vmatmul.mubr.bf16.gmra.mrb[0].mxu0 %v84
    %v1540 = vpop.f32.mrb[0].mxu0
    %v1541 = vadd.f32 %v1498, %v1540
    %v1542 = vpop.f32.mrb[0].mxu0
    %v1543 = vadd.f32 %v1500, %v1542
    %v1544 = vpop.f32.mrb[0].mxu0
    %v1545 = vadd.f32 %v1502, %v1544
    %v1546 = vpop.f32.mrb[0].mxu0
    %v1547 = vadd.f32 %v1504, %v1546
    %1548 = vdwg.mxu0
    %1549 = vmatprep.subr.bf16.mxu0 %v1026
    %1550 = vmatpush1.bf16.msra.mxu0 %v1025
    %1551 = vmatprep.subr.bf16.mxu0 %v1030
    %1552 = vmatpush1.bf16.msra.mxu0 %v1029
    %1553 = vmatprep.subr.bf16.mxu0 %v1034
    %1554 = vmatpush1.bf16.msra.mxu0 %v1033
    %1555 = vmatprep.subr.bf16.mxu0 %v1038
    %1556 = vmatpush1.bf16.msra.mxu0 %v1037
    %1557 = vmatprep.subr.bf16.mxu0 %v1042
    %1558 = vmatpush1.bf16.msra.mxu0 %v1041
    %1559 = vmatprep.subr.bf16.mxu0 %v1046
    %1560 = vmatpush1.bf16.msra.mxu0 %v1045
    %1561 = vmatprep.subr.bf16.mxu0 %v1050
    %1562 = vmatpush1.bf16.msra.mxu0 %v1049
    %1563 = vmatprep.subr.bf16.mxu0 %v1054
    %1564 = vmatpush1.bf16.msra.mxu0 %v1053
    %1565 = vmatprep.subr.bf16.mxu0 %v1058
    %1566 = vmatpush1.bf16.msra.mxu0 %v1057
    %1567 = vmatprep.subr.bf16.mxu0 %v1062
    %1568 = vmatpush1.bf16.msra.mxu0 %v1061
    %1569 = vmatprep.subr.bf16.mxu0 %v1066
    %1570 = vmatpush1.bf16.msra.mxu0 %v1065
    %1571 = vmatprep.subr.bf16.mxu0 %v1070
    %1572 = vmatpush1.bf16.msra.mxu0 %v1069
    %1573 = vmatprep.subr.bf16.mxu0 %v1074
    %1574 = vmatpush1.bf16.msra.mxu0 %v1073
    %1575 = vmatprep.subr.bf16.mxu0 %v1078
    %1576 = vmatpush1.bf16.msra.mxu0 %v1077
    %1577 = vmatprep.subr.bf16.mxu0 %v1082
    %1578 = vmatpush1.bf16.msra.mxu0 %v1081
    %1579 = vmatprep.subr.bf16.mxu0 %v1086
    %1580 = vmatpush1.bf16.msra.mxu0 %v1085
    %1581 = vmatprep.mubr.bf16.mxu0 %v87
    %1582 = vmatmul.mubr.bf16.gmra.mrb[0].mxu0 %v86
    %v1583 = vpop.f32.mrb[0].mxu0
    %v1584 = vadd.f32 %v1541, %v1583
    %v1585 = vpop.f32.mrb[0].mxu0
    %v1586 = vadd.f32 %v1543, %v1585
    %v1587 = vpop.f32.mrb[0].mxu0
    %v1588 = vadd.f32 %v1545, %v1587
    %v1589 = vpop.f32.mrb[0].mxu0
    %v1590 = vadd.f32 %v1547, %v1589
    %1591 = vdwg.mxu0
    %1592 = vmatprep.subr.bf16.mxu0 %v1090
    %1593 = vmatpush1.bf16.msra.mxu0 %v1089
    %1594 = vmatprep.subr.bf16.mxu0 0
    %1595 = vmatpush1.bf16.msra.mxu0 0
    %1596 = vmatprep.subr.bf16.mxu0 0
    %1597 = vmatpush1.bf16.msra.mxu0 0
    %1598 = vmatprep.subr.bf16.mxu0 0
    %1599 = vmatpush1.bf16.msra.mxu0 0
    %1600 = vmatprep.subr.bf16.mxu0 0
    %1601 = vmatpush1.bf16.msra.mxu0 0
    %1602 = vmatprep.subr.bf16.mxu0 0
    %1603 = vmatpush1.bf16.msra.mxu0 0
    %1604 = vmatprep.subr.bf16.mxu0 0
    %1605 = vmatpush1.bf16.msra.mxu0 0
    %1606 = vmatprep.subr.bf16.mxu0 0
    %1607 = vmatpush1.bf16.msra.mxu0 0
    %1608 = vmatprep.subr.bf16.mxu0 0
    %1609 = vmatpush1.bf16.msra.mxu0 0
    %1610 = vmatprep.subr.bf16.mxu0 0
    %1611 = vmatpush1.bf16.msra.mxu0 0
    %1612 = vmatprep.subr.bf16.mxu0 0
    %1613 = vmatpush1.bf16.msra.mxu0 0
    %1614 = vmatprep.subr.bf16.mxu0 0
    %1615 = vmatpush1.bf16.msra.mxu0 0
    %1616 = vmatprep.subr.bf16.mxu0 0
    %1617 = vmatpush1.bf16.msra.mxu0 0
    %1618 = vmatprep.subr.bf16.mxu0 0
    %1619 = vmatpush1.bf16.msra.mxu0 0
    %1620 = vmatprep.subr.bf16.mxu0 0
    %1621 = vmatpush1.bf16.msra.mxu0 0
    %1622 = vmatprep.subr.bf16.mxu0 0
    %1623 = vmatpush1.bf16.msra.mxu0 0
    %1624 = vmatprep.mubr.bf16.mxu0 0
    %1625 = vmatmul.mubr.bf16.gmra.mrb[0].mxu0 %v1289
    %v1626 = vpop.f32.mrb[0].mxu0
    %v1627 = vadd.f32 %v1584, %v1626
    %v1628 = vpop.f32.mrb[0].mxu0
    %v1629 = vadd.f32 %v1586, %v1628
    %v1630 = vpop.f32.mrb[0].mxu0
    %v1631 = vadd.f32 %v1588, %v1630
    %v1632 = vpop.f32.mrb[0].mxu0
    %v1633 = vadd.f32 %v1590, %v1632
    %1634 = vdwg.mxu0
    %vm1635 = vcmp.gt.f32.partialorder %v1455, 0.0
    %vm1636 = vcmp.gt.f32.partialorder %v1457, 0.0
    %vm1637 = vcmp.gt.f32.partialorder %v1627, 0.0
    %vm1638 = vcmp.gt.f32.partialorder %v1629, 0.0
    %vm1639 = vcmp.gt.f32.partialorder %v1459, 0.0
    %vm1640 = vcmp.gt.f32.partialorder %v1461, 0.0
    %vm1641 = vcmp.gt.f32.partialorder %v1631, 0.0
    %vm1642 = vcmp.gt.f32.partialorder %v1633, 0.0
    %v1643 = vmul.f32 %v1455, 0.01
    %v1644 = vmul.f32 %v1457, 0.01
    %v1645 = vmul.f32 %v1627, 0.01
    %v1646 = vmul.f32 %v1629, 0.01
    %v1647 = vmul.f32 %v1459, 0.01
    %v1648 = vmul.f32 %v1461, 0.01
    %v1649 = vmul.f32 %v1631, 0.01
    %v1650 = vmul.f32 %v1633, 0.01
    %v1651 = vsel %vm1635, %v1455, %v1643
    %v1652 = vsel %vm1636, %v1457, %v1644
    %v1653 = vsel %vm1637, %v1627, %v1645
    %v1654 = vsel %vm1638, %v1629, %v1646
    %v1655 = vsel %vm1639, %v1459, %v1647
    %v1656 = vsel %vm1640, %v1461, %v1648
    %v1657 = vsel %vm1641, %v1631, %v1649
    %v1658 = vsel %vm1642, %v1633, %v1650
    %v1659 = vpack.c.bf16 %v1655, %v1651
    %v1660 = vpack.c.bf16 %v1656, %v1652
    %v1661 = vpack.c.bf16 %v1657, %v1653
    %v1662 = vpack.c.bf16 %v1658, %v1654
    %v1663 = vld [vmem:[#allocation4] sm:$0xff]
    %v1664 = vld [vmem:[#allocation4 + $0x8] sm:$0xf]
    %v1665 = vld [vmem:[#allocation4 + $0xc] sm:$0xff]
    %v1666 = vld [vmem:[#allocation4 + $0x14] sm:$0xf]
    %v1667 = vld [vmem:[#allocation4 + $0x18] sm:$0xff]
    %v1668 = vld [vmem:[#allocation4 + $0x20] sm:$0xf]
    %v1669 = vld [vmem:[#allocation4 + $0x24] sm:$0xff]
    %v1670 = vld [vmem:[#allocation4 + $0x2c] sm:$0xf]
    %v1671 = vld [vmem:[#allocation4 + $0x30] sm:$0xff]
    %v1672 = vld [vmem:[#allocation4 + $0x38] sm:$0xf]
    %v1673 = vld [vmem:[#allocation4 + $0x3c] sm:$0xff]
    %v1674 = vld [vmem:[#allocation4 + $0x44] sm:$0xf]
    %v1675 = vld [vmem:[#allocation4 + $0x48] sm:$0xff]
    %v1676 = vld [vmem:[#allocation4 + $0x50] sm:$0xf]
    %v1677 = vld [vmem:[#allocation4 + $0x54] sm:$0xff]
    %v1678 = vld [vmem:[#allocation4 + $0x5c] sm:$0xf]
    %v1679 = vld [vmem:[#allocation4 + $0x60] sm:$0xff]
    %v1680 = vld [vmem:[#allocation4 + $0x68] sm:$0xf]
    %v1681 = vld [vmem:[#allocation4 + $0x6c] sm:$0xff]
    %v1682 = vld [vmem:[#allocation4 + $0x74] sm:$0xf]
    %v1683 = vld [vmem:[#allocation4 + $0x78] sm:$0xff]
    %v1684 = vld [vmem:[#allocation4 + $0x80] sm:$0xf]
    %v1685 = vld [vmem:[#allocation4 + $0x84] sm:$0xff]
    %v1686 = vld [vmem:[#allocation4 + $0x8c] sm:$0xf]
    %v1687 = vld [vmem:[#allocation4 + $0x90] sm:$0xff]
    %v1688 = vld [vmem:[#allocation4 + $0x98] sm:$0xf]
    %v1689 = vld [vmem:[#allocation4 + $0x9c] sm:$0xff]
    %v1690 = vld [vmem:[#allocation4 + $0xa4] sm:$0xf]
    %v1691 = vld [vmem:[#allocation4 + $0xa8] sm:$0xff]
    %v1692 = vld [vmem:[#allocation4 + $0xb0] sm:$0xf]
    %v1693 = vld [vmem:[#allocation4 + $0xb4] sm:$0xff]
    %v1694 = vld [vmem:[#allocation4 + $0xbc] sm:$0xf]
    %v1695 = vld [vmem:[#allocation4 + $0xc0] sm:$0xff]
    %v1696 = vld [vmem:[#allocation4 + $0xc8] sm:$0xf]
    %v1697 = vld [vmem:[#allocation4 + $0xcc] sm:$0xff]
    %v1698 = vld [vmem:[#allocation4 + $0xd4] sm:$0xf]
    %v1699 = vld [vmem:[#allocation4 + $0xd8] sm:$0xff]
    %v1700 = vld [vmem:[#allocation4 + $0xe0] sm:$0xf]
    %v1701 = vld [vmem:[#allocation4 + $0xe4] sm:$0xff]
    %v1702 = vld [vmem:[#allocation4 + $0xec] sm:$0xf]
    %v1703 = vld [vmem:[#allocation4 + $0xf0] sm:$0xff]
    %v1704 = vld [vmem:[#allocation4 + $0xf8] sm:$0xf]
    %v1705 = vld [vmem:[#allocation4 + $0xfc] sm:$0xff]
    %v1706 = vld [vmem:[#allocation4 + $0x104] sm:$0xf]
    %v1707 = vld [vmem:[#allocation4 + $0x108] sm:$0xff]
    %v1708 = vld [vmem:[#allocation4 + $0x110] sm:$0xf]
    %v1709 = vld [vmem:[#allocation4 + $0x114] sm:$0xff]
    %v1710 = vld [vmem:[#allocation4 + $0x11c] sm:$0xf]
    %v1711 = vld [vmem:[#allocation4 + $0x120] sm:$0xff]
    %v1712 = vld [vmem:[#allocation4 + $0x128] sm:$0xf]
    %v1713 = vld [vmem:[#allocation4 + $0x12c] sm:$0xff]
    %v1714 = vld [vmem:[#allocation4 + $0x134] sm:$0xf]
    %v1715 = vld [vmem:[#allocation4 + $0x138] sm:$0xff]
    %v1716 = vld [vmem:[#allocation4 + $0x140] sm:$0xf]
    %v1717 = vld [vmem:[#allocation4 + $0x144] sm:$0xff]
    %v1718 = vld [vmem:[#allocation4 + $0x14c] sm:$0xf]
    %v1719 = vld [vmem:[#allocation4 + $0x150] sm:$0xff]
    %v1720 = vld [vmem:[#allocation4 + $0x158] sm:$0xf]
    %v1721 = vld [vmem:[#allocation4 + $0x15c] sm:$0xff]
    %v1722 = vld [vmem:[#allocation4 + $0x164] sm:$0xf]
    %v1723 = vld [vmem:[#allocation4 + $0x168] sm:$0xff]
    %v1724 = vld [vmem:[#allocation4 + $0x170] sm:$0xf]
    %v1725 = vld [vmem:[#allocation4 + $0x174] sm:$0xff]
    %v1726 = vld [vmem:[#allocation4 + $0x17c] sm:$0xf]
    %v1727 = vld [vmem:[#allocation4 + $0x180] sm:$0xff]
    %v1728 = vld [vmem:[#allocation4 + $0x188] sm:$0xf]
    %v1729 = vld [vmem:[#allocation4 + $0x18c] sm:$0xff]
    %v1730 = vld [vmem:[#allocation4 + $0x194] sm:$0xf]
    %v1731 = vld [vmem:[#allocation4 + $0x198] sm:$0xff]
    %v1732 = vld [vmem:[#allocation4 + $0x1a0] sm:$0xf]
    %v1733 = vld [vmem:[#allocation4 + $0x1a4] sm:$0xff]
    %v1734 = vld [vmem:[#allocation4 + $0x1ac] sm:$0xf]
    %v1735 = vld [vmem:[#allocation4 + $0x1b0] sm:$0xff]
    %v1736 = vld [vmem:[#allocation4 + $0x1b8] sm:$0xf]
    %v1737 = vld [vmem:[#allocation4 + $0x1bc] sm:$0xff]
    %v1738 = vld [vmem:[#allocation4 + $0x1c4] sm:$0xf]
    %v1739 = vld [vmem:[#allocation4 + $0x1c8] sm:$0xff]
    %v1740 = vld [vmem:[#allocation4 + $0x1d0] sm:$0xf]
    %v1741 = vld [vmem:[#allocation4 + $0x1d4] sm:$0xff]
    %v1742 = vld [vmem:[#allocation4 + $0x1dc] sm:$0xf]
    %v1743 = vld [vmem:[#allocation4 + $0x1e0] sm:$0xff]
    %v1744 = vld [vmem:[#allocation4 + $0x1e8] sm:$0xf]
    %v1745 = vld [vmem:[#allocation4 + $0x1ec] sm:$0xff]
    %v1746 = vld [vmem:[#allocation4 + $0x1f4] sm:$0xf]
    %v1747 = vld [vmem:[#allocation4 + $0x1f8] sm:$0xff]
    %v1748 = vld [vmem:[#allocation4 + $0x200] sm:$0xf]
    %v1749 = vld [vmem:[#allocation4 + $0x204] sm:$0xff]
    %v1750 = vld [vmem:[#allocation4 + $0x20c] sm:$0xf]
    %v1751 = vld [vmem:[#allocation4 + $0x210] sm:$0xff]
    %v1752 = vld [vmem:[#allocation4 + $0x218] sm:$0xf]
    %v1753 = vld [vmem:[#allocation4 + $0x21c] sm:$0xff]
    %v1754 = vld [vmem:[#allocation4 + $0x224] sm:$0xf]
    %v1755 = vld [vmem:[#allocation4 + $0x228] sm:$0xff]
    %v1756 = vld [vmem:[#allocation4 + $0x230] sm:$0xf]
    %v1757 = vld [vmem:[#allocation4 + $0x234] sm:$0xff]
    %v1758 = vld [vmem:[#allocation4 + $0x23c] sm:$0xf]
    %v1759 = vld [vmem:[#allocation4 + $0x240] sm:$0xff]
    %v1760 = vld [vmem:[#allocation4 + $0x248] sm:$0xf]
    %v1761 = vld [vmem:[#allocation4 + $0x24c] sm:$0xff]
    %v1762 = vld [vmem:[#allocation4 + $0x254] sm:$0xf]
    %v1763 = vld [vmem:[#allocation4 + $0x258] sm:$0xff]
    %v1764 = vld [vmem:[#allocation4 + $0x260] sm:$0xf]
    %v1765 = vld [vmem:[#allocation4 + $0x264] sm:$0xff]
    %v1766 = vld [vmem:[#allocation4 + $0x26c] sm:$0xf]
    %v1767 = vld [vmem:[#allocation4 + $0x270] sm:$0xff]
    %v1768 = vld [vmem:[#allocation4 + $0x278] sm:$0xf]
    %v1769 = vld [vmem:[#allocation4 + $0x27c] sm:$0xff]
    %v1770 = vld [vmem:[#allocation4 + $0x284] sm:$0xf]
    %v1771 = vld [vmem:[#allocation4 + $0x288] sm:$0xff]
    %v1772 = vld [vmem:[#allocation4 + $0x290] sm:$0xf]
    %v1773 = vld [vmem:[#allocation4 + $0x294] sm:$0xff]
    %v1774 = vld [vmem:[#allocation4 + $0x29c] sm:$0xf]
    %v1775 = vld [vmem:[#allocation4 + $0x2a0] sm:$0xff]
    %v1776 = vld [vmem:[#allocation4 + $0x2a8] sm:$0xf]
    %v1777 = vld [vmem:[#allocation4 + $0x2ac] sm:$0xff]
    %v1778 = vld [vmem:[#allocation4 + $0x2b4] sm:$0xf]
    %v1779 = vld [vmem:[#allocation4 + $0x2b8] sm:$0xff]
    %v1780 = vld [vmem:[#allocation4 + $0x2c0] sm:$0xf]
    %v1781 = vld [vmem:[#allocation4 + $0x2c4] sm:$0xff]
    %v1782 = vld [vmem:[#allocation4 + $0x2cc] sm:$0xf]
    %v1783 = vld [vmem:[#allocation4 + $0x2d0] sm:$0xff]
    %v1784 = vld [vmem:[#allocation4 + $0x2d8] sm:$0xf]
    %v1785 = vld [vmem:[#allocation4 + $0x2dc] sm:$0xff]
    %v1786 = vld [vmem:[#allocation4 + $0x2e4] sm:$0xf]
    %v1787 = vld [vmem:[#allocation4 + $0x2e8] sm:$0xff]
    %v1788 = vld [vmem:[#allocation4 + $0x2f0] sm:$0xf]
    %v1789 = vld [vmem:[#allocation4 + $0x2f4] sm:$0xff]
    %v1790 = vld [vmem:[#allocation4 + $0x2fc] sm:$0xf]
    %v1791 = vld [vmem:[%s4] sm:$0x7]
    %v1793 = vlaneseq
    %v1794 = vshrl.u32 %v1793, 7
    %v1795 = vsub.s32 0, %v1794
    %v1796 = vrot.slane %v1791, %v1795
    %v1797 = vlaneseq
    %v1798 = vshrl.u32 %v1797, 7
    %v1799 = vsub.s32 1, %v1798
    %v1800 = vrot.slane %v1791, %v1799
    %v1801 = vlaneseq
    %v1802 = vshrl.u32 %v1801, 7
    %v1803 = vsub.s32 2, %v1802
    %v1804 = vrot.slane %v1791, %v1803
    %v1936 = vunpack.c.l.b16 %v1663
    %v1937 = vunpack.c.h.b16 %v1663
    %v1938 = vunpack.c.l.b16 %v1664
    %v1939 = vunpack.c.l.b16 %v1665
    %v1940 = vunpack.c.h.b16 %v1665
    %v1941 = vunpack.c.l.b16 %v1666
    %v1942 = vunpack.c.l.b16 %v1667
    %v1943 = vunpack.c.h.b16 %v1667
    %v1944 = vunpack.c.l.b16 %v1668
    %v1945 = vunpack.c.l.b16 %v1669
    %v1946 = vunpack.c.h.b16 %v1669
    %v1947 = vunpack.c.l.b16 %v1670
    %v1948 = vunpack.c.l.b16 %v1671
    %v1949 = vunpack.c.h.b16 %v1671
    %v1950 = vunpack.c.l.b16 %v1672
    %v1951 = vunpack.c.l.b16 %v1673
    %v1952 = vunpack.c.h.b16 %v1673
    %v1953 = vunpack.c.l.b16 %v1674
    %v1954 = vunpack.c.l.b16 %v1675
    %v1955 = vunpack.c.h.b16 %v1675
    %v1956 = vunpack.c.l.b16 %v1676
    %v1957 = vunpack.c.l.b16 %v1677
    %v1958 = vunpack.c.h.b16 %v1677
    %v1959 = vunpack.c.l.b16 %v1678
    %v1960 = vunpack.c.l.b16 %v1679
    %v1961 = vunpack.c.h.b16 %v1679
    %v1962 = vunpack.c.l.b16 %v1680
    %v1963 = vunpack.c.l.b16 %v1681
    %v1964 = vunpack.c.h.b16 %v1681
    %v1965 = vunpack.c.l.b16 %v1682
    %v1966 = vunpack.c.l.b16 %v1683
    %v1967 = vunpack.c.h.b16 %v1683
    %v1968 = vunpack.c.l.b16 %v1684
    %v1969 = vunpack.c.l.b16 %v1685
    %v1970 = vunpack.c.h.b16 %v1685
    %v1971 = vunpack.c.l.b16 %v1686
    %v1972 = vunpack.c.l.b16 %v1687
    %v1973 = vunpack.c.h.b16 %v1687
    %v1974 = vunpack.c.l.b16 %v1688
    %v1975 = vunpack.c.l.b16 %v1689
    %v1976 = vunpack.c.h.b16 %v1689
    %v1977 = vunpack.c.l.b16 %v1690
    %v1978 = vunpack.c.l.b16 %v1691
    %v1979 = vunpack.c.h.b16 %v1691
    %v1980 = vunpack.c.l.b16 %v1692
    %v1981 = vunpack.c.l.b16 %v1693
    %v1982 = vunpack.c.h.b16 %v1693
    %v1983 = vunpack.c.l.b16 %v1694
    %v1984 = vunpack.c.l.b16 %v1695
    %v1985 = vunpack.c.h.b16 %v1695
    %v1986 = vunpack.c.l.b16 %v1696
    %v1987 = vunpack.c.l.b16 %v1697
    %v1988 = vunpack.c.h.b16 %v1697
    %v1989 = vunpack.c.l.b16 %v1698
    %v1990 = vunpack.c.l.b16 %v1699
    %v1991 = vunpack.c.h.b16 %v1699
    %v1992 = vunpack.c.l.b16 %v1700
    %v1993 = vunpack.c.l.b16 %v1701
    %v1994 = vunpack.c.h.b16 %v1701
    %v1995 = vunpack.c.l.b16 %v1702
    %v1996 = vunpack.c.l.b16 %v1703
    %v1997 = vunpack.c.h.b16 %v1703
    %v1998 = vunpack.c.l.b16 %v1704
    %v1999 = vunpack.c.l.b16 %v1705
    %v2000 = vunpack.c.h.b16 %v1705
    %v2001 = vunpack.c.l.b16 %v1706
    %v2002 = vunpack.c.l.b16 %v1707
    %v2003 = vunpack.c.h.b16 %v1707
    %v2004 = vunpack.c.l.b16 %v1708
    %v2005 = vunpack.c.l.b16 %v1709
    %v2006 = vunpack.c.h.b16 %v1709
    %v2007 = vunpack.c.l.b16 %v1710
    %v2008 = vunpack.c.l.b16 %v1711
    %v2009 = vunpack.c.h.b16 %v1711
    %v2010 = vunpack.c.l.b16 %v1712
    %v2011 = vunpack.c.l.b16 %v1713
    %v2012 = vunpack.c.h.b16 %v1713
    %v2013 = vunpack.c.l.b16 %v1714
    %v2014 = vunpack.c.l.b16 %v1715
    %v2015 = vunpack.c.h.b16 %v1715
    %v2016 = vunpack.c.l.b16 %v1716
    %v2017 = vunpack.c.l.b16 %v1717
    %v2018 = vunpack.c.h.b16 %v1717
    %v2019 = vunpack.c.l.b16 %v1718
    %v2020 = vunpack.c.l.b16 %v1719
    %v2021 = vunpack.c.h.b16 %v1719
    %v2022 = vunpack.c.l.b16 %v1720
    %v2023 = vunpack.c.l.b16 %v1721
    %v2024 = vunpack.c.h.b16 %v1721
    %v2025 = vunpack.c.l.b16 %v1722
    %v2026 = vunpack.c.l.b16 %v1723
    %v2027 = vunpack.c.h.b16 %v1723
    %v2028 = vunpack.c.l.b16 %v1724
    %v2029 = vunpack.c.l.b16 %v1725
    %v2030 = vunpack.c.h.b16 %v1725
    %v2031 = vunpack.c.l.b16 %v1726
    %v2032 = vunpack.c.l.b16 %v1727
    %v2033 = vunpack.c.h.b16 %v1727
    %v2034 = vunpack.c.l.b16 %v1728
    %v2035 = vunpack.c.l.b16 %v1729
    %v2036 = vunpack.c.h.b16 %v1729
    %v2037 = vunpack.c.l.b16 %v1730
    %v2038 = vunpack.c.l.b16 %v1731
    %v2039 = vunpack.c.h.b16 %v1731
    %v2040 = vunpack.c.l.b16 %v1732
    %v2041 = vunpack.c.l.b16 %v1733
    %v2042 = vunpack.c.h.b16 %v1733
    %v2043 = vunpack.c.l.b16 %v1734
    %v2044 = vunpack.c.l.b16 %v1735
    %v2045 = vunpack.c.h.b16 %v1735
    %v2046 = vunpack.c.l.b16 %v1736
    %v2047 = vunpack.c.l.b16 %v1737
    %v2048 = vunpack.c.h.b16 %v1737
    %v2049 = vunpack.c.l.b16 %v1738
    %v2050 = vunpack.c.l.b16 %v1739
    %v2051 = vunpack.c.h.b16 %v1739
    %v2052 = vunpack.c.l.b16 %v1740
    %v2053 = vunpack.c.l.b16 %v1741
    %v2054 = vunpack.c.h.b16 %v1741
    %v2055 = vunpack.c.l.b16 %v1742
    %v2056 = vunpack.c.l.b16 %v1743
    %v2057 = vunpack.c.h.b16 %v1743
    %v2058 = vunpack.c.l.b16 %v1744
    %v2059 = vunpack.c.l.b16 %v1745
    %v2060 = vunpack.c.h.b16 %v1745
    %v2061 = vunpack.c.l.b16 %v1746
    %v2062 = vunpack.c.l.b16 %v1747
    %v2063 = vunpack.c.h.b16 %v1747
    %v2064 = vunpack.c.l.b16 %v1748
    %v2065 = vunpack.c.l.b16 %v1749
    %v2066 = vunpack.c.h.b16 %v1749
    %v2067 = vunpack.c.l.b16 %v1750
    %v2068 = vunpack.c.l.b16 %v1751
    %v2069 = vunpack.c.h.b16 %v1751
    %v2070 = vunpack.c.l.b16 %v1752
    %v2071 = vunpack.c.l.b16 %v1753
    %v2072 = vunpack.c.h.b16 %v1753
    %v2073 = vunpack.c.l.b16 %v1754
    %v2074 = vunpack.c.l.b16 %v1755
    %v2075 = vunpack.c.h.b16 %v1755
    %v2076 = vunpack.c.l.b16 %v1756
    %v2077 = vunpack.c.l.b16 %v1757
    %v2078 = vunpack.c.h.b16 %v1757
    %v2079 = vunpack.c.l.b16 %v1758
    %v2080 = vunpack.c.l.b16 %v1759
    %v2081 = vunpack.c.h.b16 %v1759
    %v2082 = vunpack.c.l.b16 %v1760
    %v2083 = vunpack.c.l.b16 %v1761
    %v2084 = vunpack.c.h.b16 %v1761
    %v2085 = vunpack.c.l.b16 %v1762
    %v2086 = vunpack.c.l.b16 %v1763
    %v2087 = vunpack.c.h.b16 %v1763
    %v2088 = vunpack.c.l.b16 %v1764
    %v2089 = vunpack.c.l.b16 %v1765
    %v2090 = vunpack.c.h.b16 %v1765
    %v2091 = vunpack.c.l.b16 %v1766
    %v2092 = vunpack.c.l.b16 %v1767
    %v2093 = vunpack.c.h.b16 %v1767
    %v2094 = vunpack.c.l.b16 %v1768
    %v2095 = vunpack.c.l.b16 %v1769
    %v2096 = vunpack.c.h.b16 %v1769
    %v2097 = vunpack.c.l.b16 %v1770
    %v2098 = vunpack.c.l.b16 %v1771
    %v2099 = vunpack.c.h.b16 %v1771
    %v2100 = vunpack.c.l.b16 %v1772
    %v2101 = vunpack.c.l.b16 %v1773
    %v2102 = vunpack.c.h.b16 %v1773
    %v2103 = vunpack.c.l.b16 %v1774
    %v2104 = vunpack.c.l.b16 %v1775
    %v2105 = vunpack.c.h.b16 %v1775
    %v2106 = vunpack.c.l.b16 %v1776
    %v2107 = vunpack.c.l.b16 %v1777
    %v2108 = vunpack.c.h.b16 %v1777
    %v2109 = vunpack.c.l.b16 %v1778
    %v2110 = vunpack.c.l.b16 %v1779
    %v2111 = vunpack.c.h.b16 %v1779
    %v2112 = vunpack.c.l.b16 %v1780
    %v2113 = vunpack.c.l.b16 %v1781
    %v2114 = vunpack.c.h.b16 %v1781
    %v2115 = vunpack.c.l.b16 %v1782
    %v2116 = vunpack.c.l.b16 %v1783
    %v2117 = vunpack.c.h.b16 %v1783
    %v2118 = vunpack.c.l.b16 %v1784
    %v2119 = vunpack.c.l.b16 %v1785
    %v2120 = vunpack.c.h.b16 %v1785
    %v2121 = vunpack.c.l.b16 %v1786
    %v2122 = vunpack.c.l.b16 %v1787
    %v2123 = vunpack.c.h.b16 %v1787
    %v2124 = vunpack.c.l.b16 %v1788
    %v2125 = vunpack.c.l.b16 %v1789
    %v2126 = vunpack.c.h.b16 %v1789
    %v2127 = vunpack.c.l.b16 %v1790
    %v2128 = vpack.c.b16 %v1939, %v1936
    %v2129 = vpack.c.b16 %v1940, %v1937
    %v2130 = vpack.c.b16 %v1941, %v1938
    %v2131 = vpack.c.b16 %v1945, %v1942
    %v2132 = vpack.c.b16 %v1946, %v1943
    %v2133 = vpack.c.b16 %v1947, %v1944
    %v2134 = vpack.c.b16 %v1951, %v1948
    %v2135 = vpack.c.b16 %v1952, %v1949
    %v2136 = vpack.c.b16 %v1953, %v1950
    %v2137 = vpack.c.b16 %v1957, %v1954
    %v2138 = vpack.c.b16 %v1958, %v1955
    %v2139 = vpack.c.b16 %v1959, %v1956
    %v2140 = vpack.c.b16 %v1963, %v1960
    %v2141 = vpack.c.b16 %v1964, %v1961
    %v2142 = vpack.c.b16 %v1965, %v1962
    %v2143 = vpack.c.b16 %v1969, %v1966
    %v2144 = vpack.c.b16 %v1970, %v1967
    %v2145 = vpack.c.b16 %v1971, %v1968
    %v2146 = vpack.c.b16 %v1975, %v1972
    %v2147 = vpack.c.b16 %v1976, %v1973
    %v2148 = vpack.c.b16 %v1977, %v1974
    %v2149 = vpack.c.b16 %v1981, %v1978
    %v2150 = vpack.c.b16 %v1982, %v1979
    %v2151 = vpack.c.b16 %v1983, %v1980
    %v2152 = vpack.c.b16 %v1987, %v1984
    %v2153 = vpack.c.b16 %v1988, %v1985
    %v2154 = vpack.c.b16 %v1989, %v1986
    %v2155 = vpack.c.b16 %v1993, %v1990
    %v2156 = vpack.c.b16 %v1994, %v1991
    %v2157 = vpack.c.b16 %v1995, %v1992
    %v2158 = vpack.c.b16 %v1999, %v1996
    %v2159 = vpack.c.b16 %v2000, %v1997
    %v2160 = vpack.c.b16 %v2001, %v1998
    %v2161 = vpack.c.b16 %v2005, %v2002
    %v2162 = vpack.c.b16 %v2006, %v2003
    %v2163 = vpack.c.b16 %v2007, %v2004
    %v2164 = vpack.c.b16 %v2011, %v2008
    %v2165 = vpack.c.b16 %v2012, %v2009
    %v2166 = vpack.c.b16 %v2013, %v2010
    %v2167 = vpack.c.b16 %v2017, %v2014
    %v2168 = vpack.c.b16 %v2018, %v2015
    %v2169 = vpack.c.b16 %v2019, %v2016
    %v2170 = vpack.c.b16 %v2023, %v2020
    %v2171 = vpack.c.b16 %v2024, %v2021
    %v2172 = vpack.c.b16 %v2025, %v2022
    %v2173 = vpack.c.b16 %v2029, %v2026
    %v2174 = vpack.c.b16 %v2030, %v2027
    %v2175 = vpack.c.b16 %v2031, %v2028
    %v2176 = vpack.c.b16 %v2035, %v2032
    %v2177 = vpack.c.b16 %v2036, %v2033
    %v2178 = vpack.c.b16 %v2037, %v2034
    %v2179 = vpack.c.b16 %v2041, %v2038
    %v2180 = vpack.c.b16 %v2042, %v2039
    %v2181 = vpack.c.b16 %v2043, %v2040
    %v2182 = vpack.c.b16 %v2047, %v2044
    %v2183 = vpack.c.b16 %v2048, %v2045
    %v2184 = vpack.c.b16 %v2049, %v2046
    %v2185 = vpack.c.b16 %v2053, %v2050
    %v2186 = vpack.c.b16 %v2054, %v2051
    %v2187 = vpack.c.b16 %v2055, %v2052
    %v2188 = vpack.c.b16 %v2059, %v2056
    %v2189 = vpack.c.b16 %v2060, %v2057
    %v2190 = vpack.c.b16 %v2061, %v2058
    %v2191 = vpack.c.b16 %v2065, %v2062
    %v2192 = vpack.c.b16 %v2066, %v2063
    %v2193 = vpack.c.b16 %v2067, %v2064
    %v2194 = vpack.c.b16 %v2071, %v2068
    %v2195 = vpack.c.b16 %v2072, %v2069
    %v2196 = vpack.c.b16 %v2073, %v2070
    %v2197 = vpack.c.b16 %v2077, %v2074
    %v2198 = vpack.c.b16 %v2078, %v2075
    %v2199 = vpack.c.b16 %v2079, %v2076
    %v2200 = vpack.c.b16 %v2083, %v2080
    %v2201 = vpack.c.b16 %v2084, %v2081
    %v2202 = vpack.c.b16 %v2085, %v2082
    %v2203 = vpack.c.b16 %v2089, %v2086
    %v2204 = vpack.c.b16 %v2090, %v2087
    %v2205 = vpack.c.b16 %v2091, %v2088
    %v2206 = vpack.c.b16 %v2095, %v2092
    %v2207 = vpack.c.b16 %v2096, %v2093
    %v2208 = vpack.c.b16 %v2097, %v2094
    %v2209 = vpack.c.b16 %v2101, %v2098
    %v2210 = vpack.c.b16 %v2102, %v2099
    %v2211 = vpack.c.b16 %v2103, %v2100
    %v2212 = vpack.c.b16 %v2107, %v2104
    %v2213 = vpack.c.b16 %v2108, %v2105
    %v2214 = vpack.c.b16 %v2109, %v2106
    %v2215 = vpack.c.b16 %v2113, %v2110
    %v2216 = vpack.c.b16 %v2114, %v2111
    %v2217 = vpack.c.b16 %v2115, %v2112
    %v2218 = vpack.c.b16 %v2119, %v2116
    %v2219 = vpack.c.b16 %v2120, %v2117
    %v2220 = vpack.c.b16 %v2121, %v2118
    %v2221 = vpack.c.b16 %v2125, %v2122
    %v2222 = vpack.c.b16 %v2126, %v2123
    %v2223 = vpack.c.b16 %v2127, %v2124
    %2320 = vmatprep.subr.bf16.mxu0 %v2129
    %2321 = vmatpush1.bf16.msra.mxu0 %v2128
    %2322 = vmatprep.subr.bf16.mxu0 %v2132
    %2323 = vmatpush1.bf16.msra.mxu0 %v2131
    %2324 = vmatprep.subr.bf16.mxu0 %v2135
    %2325 = vmatpush1.bf16.msra.mxu0 %v2134
    %2326 = vmatprep.subr.bf16.mxu0 %v2138
    %2327 = vmatpush1.bf16.msra.mxu0 %v2137
    %2328 = vmatprep.subr.bf16.mxu0 %v2141
    %2329 = vmatpush1.bf16.msra.mxu0 %v2140
    %2330 = vmatprep.subr.bf16.mxu0 %v2144
    %2331 = vmatpush1.bf16.msra.mxu0 %v2143
    %2332 = vmatprep.subr.bf16.mxu0 %v2147
    %2333 = vmatpush1.bf16.msra.mxu0 %v2146
    %2334 = vmatprep.subr.bf16.mxu0 %v2150
    %2335 = vmatpush1.bf16.msra.mxu0 %v2149
    %2336 = vmatprep.subr.bf16.mxu0 %v2153
    %2337 = vmatpush1.bf16.msra.mxu0 %v2152
    %2338 = vmatprep.subr.bf16.mxu0 %v2156
    %2339 = vmatpush1.bf16.msra.mxu0 %v2155
    %2340 = vmatprep.subr.bf16.mxu0 %v2159
    %2341 = vmatpush1.bf16.msra.mxu0 %v2158
    %2342 = vmatprep.subr.bf16.mxu0 %v2162
    %2343 = vmatpush1.bf16.msra.mxu0 %v2161
    %2344 = vmatprep.subr.bf16.mxu0 %v2165
    %2345 = vmatpush1.bf16.msra.mxu0 %v2164
    %2346 = vmatprep.subr.bf16.mxu0 %v2168
    %2347 = vmatpush1.bf16.msra.mxu0 %v2167
    %2348 = vmatprep.subr.bf16.mxu0 %v2171
    %2349 = vmatpush1.bf16.msra.mxu0 %v2170
    %2350 = vmatprep.subr.bf16.mxu0 %v2174
    %2351 = vmatpush1.bf16.msra.mxu0 %v2173
    %2352 = vmatprep.mubr.bf16.mxu0 %v1660
    %2353 = vmatmul.mubr.bf16.gmra.mrb[0].mxu0 %v1659
    %v2354 = vpop.f32.mrb[0].mxu0
    %v2355 = vadd.f32 %v1796, %v2354
    %v2356 = vpop.f32.mrb[0].mxu0
    %v2357 = vadd.f32 %v1800, %v2356
    %v2358 = vpop.f32.mrb[0].mxu0
    %v2359 = vadd.f32 %v1796, %v2358
    %v2360 = vpop.f32.mrb[0].mxu0
    %v2361 = vadd.f32 %v1800, %v2360
    %2362 = vdwg.mxu0
    %2363 = vmatprep.subr.bf16.mxu0 %v2177
    %2364 = vmatpush1.bf16.msra.mxu0 %v2176
    %2365 = vmatprep.subr.bf16.mxu0 %v2180
    %2366 = vmatpush1.bf16.msra.mxu0 %v2179
    %2367 = vmatprep.subr.bf16.mxu0 %v2183
    %2368 = vmatpush1.bf16.msra.mxu0 %v2182
    %2369 = vmatprep.subr.bf16.mxu0 %v2186
    %2370 = vmatpush1.bf16.msra.mxu0 %v2185
    %2371 = vmatprep.subr.bf16.mxu0 %v2189
    %2372 = vmatpush1.bf16.msra.mxu0 %v2188
    %2373 = vmatprep.subr.bf16.mxu0 %v2192
    %2374 = vmatpush1.bf16.msra.mxu0 %v2191
    %2375 = vmatprep.subr.bf16.mxu0 %v2195
    %2376 = vmatpush1.bf16.msra.mxu0 %v2194
    %2377 = vmatprep.subr.bf16.mxu0 %v2198
    %2378 = vmatpush1.bf16.msra.mxu0 %v2197
    %2379 = vmatprep.subr.bf16.mxu0 %v2201
    %2380 = vmatpush1.bf16.msra.mxu0 %v2200
    %2381 = vmatprep.subr.bf16.mxu0 %v2204
    %2382 = vmatpush1.bf16.msra.mxu0 %v2203
    %2383 = vmatprep.subr.bf16.mxu0 %v2207
    %2384 = vmatpush1.bf16.msra.mxu0 %v2206
    %2385 = vmatprep.subr.bf16.mxu0 %v2210
    %2386 = vmatpush1.bf16.msra.mxu0 %v2209
    %2387 = vmatprep.subr.bf16.mxu0 %v2213
    %2388 = vmatpush1.bf16.msra.mxu0 %v2212
    %2389 = vmatprep.subr.bf16.mxu0 %v2216
    %2390 = vmatpush1.bf16.msra.mxu0 %v2215
    %2391 = vmatprep.subr.bf16.mxu0 %v2219
    %2392 = vmatpush1.bf16.msra.mxu0 %v2218
    %2393 = vmatprep.subr.bf16.mxu0 %v2222
    %2394 = vmatpush1.bf16.msra.mxu0 %v2221
    %2395 = vmatprep.mubr.bf16.mxu0 %v1662
    %2396 = vmatmul.mubr.bf16.gmra.mrb[0].mxu0 %v1661
    %v2397 = vpop.f32.mrb[0].mxu0
    %v2398 = vadd.f32 %v2355, %v2397
    %v2399 = vpop.f32.mrb[0].mxu0
    %v2400 = vadd.f32 %v2357, %v2399
    %v2401 = vpop.f32.mrb[0].mxu0
    %v2402 = vadd.f32 %v2359, %v2401
    %v2403 = vpop.f32.mrb[0].mxu0
    %v2404 = vadd.f32 %v2361, %v2403
    %2405 = vdwg.mxu0
    %2406 = vmatprep.subr.bf16.mxu0 0
    %2407 = vmatpush1.bf16.msra.mxu0 %v2130
    %2408 = vmatprep.subr.bf16.mxu0 0
    %2409 = vmatpush1.bf16.msra.mxu0 %v2133
    %2410 = vmatprep.subr.bf16.mxu0 0
    %2411 = vmatpush1.bf16.msra.mxu0 %v2136
    %2412 = vmatprep.subr.bf16.mxu0 0
    %2413 = vmatpush1.bf16.msra.mxu0 %v2139
    %2414 = vmatprep.subr.bf16.mxu0 0
    %2415 = vmatpush1.bf16.msra.mxu0 %v2142
    %2416 = vmatprep.subr.bf16.mxu0 0
    %2417 = vmatpush1.bf16.msra.mxu0 %v2145
    %2418 = vmatprep.subr.bf16.mxu0 0
    %2419 = vmatpush1.bf16.msra.mxu0 %v2148
    %2420 = vmatprep.subr.bf16.mxu0 0
    %2421 = vmatpush1.bf16.msra.mxu0 %v2151
    %2422 = vmatprep.subr.bf16.mxu0 0
    %2423 = vmatpush1.bf16.msra.mxu0 %v2154
    %2424 = vmatprep.subr.bf16.mxu0 0
    %2425 = vmatpush1.bf16.msra.mxu0 %v2157
    %2426 = vmatprep.subr.bf16.mxu0 0
    %2427 = vmatpush1.bf16.msra.mxu0 %v2160
    %2428 = vmatprep.subr.bf16.mxu0 0
    %2429 = vmatpush1.bf16.msra.mxu0 %v2163
    %2430 = vmatprep.subr.bf16.mxu0 0
    %2431 = vmatpush1.bf16.msra.mxu0 %v2166
    %2432 = vmatprep.subr.bf16.mxu0 0
    %2433 = vmatpush1.bf16.msra.mxu0 %v2169
    %2434 = vmatprep.subr.bf16.mxu0 0
    %2435 = vmatpush1.bf16.msra.mxu0 %v2172
    %2436 = vmatprep.subr.bf16.mxu0 0
    %2437 = vmatpush1.bf16.msra.mxu0 %v2175
    %2438 = vmatprep.mubr.bf16.mxu0 %v1660
    %2439 = vmatmul.mubr.bf16.gmra.mrb[0].mxu0 %v1659
    %v2440 = vpop.f32.mrb[0].mxu0
    %v2441 = vadd.f32 %v1804, %v2440
    %v2442 = vpop.f32.mrb[0].mxu0
    %v2443 = vpop.f32.mrb[0].mxu0
    %v2444 = vadd.f32 %v1804, %v2443
    %v2445 = vpop.f32.mrb[0].mxu0
    %2446 = vdwg.mxu0
    %2447 = vmatprep.subr.bf16.mxu0 0
    %2448 = vmatpush1.bf16.msra.mxu0 %v2178
    %2449 = vmatprep.subr.bf16.mxu0 0
    %2450 = vmatpush1.bf16.msra.mxu0 %v2181
    %2451 = vmatprep.subr.bf16.mxu0 0
    %2452 = vmatpush1.bf16.msra.mxu0 %v2184
    %2453 = vmatprep.subr.bf16.mxu0 0
    %2454 = vmatpush1.bf16.msra.mxu0 %v2187
    %2455 = vmatprep.subr.bf16.mxu0 0
    %2456 = vmatpush1.bf16.msra.mxu0 %v2190
    %2457 = vmatprep.subr.bf16.mxu0 0
    %2458 = vmatpush1.bf16.msra.mxu0 %v2193
    %2459 = vmatprep.subr.bf16.mxu0 0
    %2460 = vmatpush1.bf16.msra.mxu0 %v2196
    %2461 = vmatprep.subr.bf16.mxu0 0
    %2462 = vmatpush1.bf16.msra.mxu0 %v2199
    %2463 = vmatprep.subr.bf16.mxu0 0
    %2464 = vmatpush1.bf16.msra.mxu0 %v2202
    %2465 = vmatprep.subr.bf16.mxu0 0
    %2466 = vmatpush1.bf16.msra.mxu0 %v2205
    %2467 = vmatprep.subr.bf16.mxu0 0
    %2468 = vmatpush1.bf16.msra.mxu0 %v2208
    %2469 = vmatprep.subr.bf16.mxu0 0
    %2470 = vmatpush1.bf16.msra.mxu0 %v2211
    %2471 = vmatprep.subr.bf16.mxu0 0
    %2472 = vmatpush1.bf16.msra.mxu0 %v2214
    %2473 = vmatprep.subr.bf16.mxu0 0
    %2474 = vmatpush1.bf16.msra.mxu0 %v2217
    %2475 = vmatprep.subr.bf16.mxu0 0
    %2476 = vmatpush1.bf16.msra.mxu0 %v2220
    %2477 = vmatprep.subr.bf16.mxu0 0
    %2478 = vmatpush1.bf16.msra.mxu0 %v2223
    %2479 = vmatprep.mubr.bf16.mxu0 %v1662
    %2480 = vmatmul.mubr.bf16.gmra.mrb[0].mxu0 %v1661
    %v2481 = vpop.f32.mrb[0].mxu0
    %v2482 = vadd.f32 %v2441, %v2481
    %v2483 = vpop.f32.mrb[0].mxu0
    %v2484 = vpop.f32.mrb[0].mxu0
    %v2485 = vadd.f32 %v2444, %v2484
    %v2486 = vpop.f32.mrb[0].mxu0
    %2487 = vdwg.mxu0
    %vm2488 = vcmp.gt.f32.partialorder %v2398, 0.0
    %vm2489 = vcmp.gt.f32.partialorder %v2400, 0.0
    %vm2490 = vcmp.gt.f32.partialorder %v2482, 0.0
    %vm2491 = vcmp.gt.f32.partialorder %v2402, 0.0
    %vm2492 = vcmp.gt.f32.partialorder %v2404, 0.0
    %vm2493 = vcmp.gt.f32.partialorder %v2485, 0.0
    %v2494 = vmul.f32 %v2398, 0.01
    %v2495 = vmul.f32 %v2400, 0.01
    %v2496 = vmul.f32 %v2482, 0.01
    %v2497 = vmul.f32 %v2402, 0.01
    %v2498 = vmul.f32 %v2404, 0.01
    %v2499 = vmul.f32 %v2485, 0.01
    %v2500 = vsel %vm2488, %v2398, %v2494
    %v2501 = vsel %vm2489, %v2400, %v2495
    %v2502 = vsel %vm2490, %v2482, %v2496
    %v2503 = vsel %vm2491, %v2402, %v2497
    %v2504 = vsel %vm2492, %v2404, %v2498
    %v2505 = vsel %vm2493, %v2485, %v2499
    %v2506 = vpack.c.bf16 %v2503, %v2500
    %v2507 = vpack.c.bf16 %v2504, %v2501
    %v2508 = vpack.c.bf16 %v2505, %v2502
    %v2509 = vld [vmem:[#allocation6] sm:$0xf]
    %v2510 = vld [vmem:[#allocation6 + $0x4] sm:$0xf]
    %v2511 = vld [vmem:[#allocation6 + $0x8] sm:$0xf]
    %v2512 = vld [vmem:[#allocation6 + $0xc] sm:$0xf]
    %v2513 = vld [vmem:[#allocation6 + $0x10] sm:$0xf]
    %v2514 = vld [vmem:[#allocation6 + $0x14] sm:$0xf]
    %v2515 = vld [vmem:[#allocation6 + $0x18] sm:$0xf]
    %v2516 = vld [vmem:[#allocation6 + $0x1c] sm:$0xf]
    %v2517 = vld [vmem:[#allocation6 + $0x20] sm:$0xf]
    %v2518 = vld [vmem:[#allocation6 + $0x24] sm:$0xf]
    %v2519 = vld [vmem:[#allocation6 + $0x28] sm:$0xf]
    %v2520 = vld [vmem:[#allocation6 + $0x2c] sm:$0xf]
    %v2521 = vld [vmem:[#allocation6 + $0x30] sm:$0xf]
    %v2522 = vld [vmem:[#allocation6 + $0x34] sm:$0xf]
    %v2523 = vld [vmem:[#allocation6 + $0x38] sm:$0xf]
    %v2524 = vld [vmem:[#allocation6 + $0x3c] sm:$0xf]
    %v2525 = vld [vmem:[#allocation6 + $0x40] sm:$0xf]
    %v2526 = vld [vmem:[#allocation6 + $0x44] sm:$0xf]
    %v2527 = vld [vmem:[#allocation6 + $0x48] sm:$0xf]
    %v2528 = vld [vmem:[#allocation6 + $0x4c] sm:$0xf]
    %v2529 = vld [vmem:[#allocation6 + $0x50] sm:$0xf]
    %v2530 = vld [vmem:[#allocation6 + $0x54] sm:$0xf]
    %v2531 = vld [vmem:[#allocation6 + $0x58] sm:$0xf]
    %v2532 = vld [vmem:[#allocation6 + $0x5c] sm:$0xf]
    %v2533 = vld [vmem:[#allocation6 + $0x60] sm:$0xf]
    %v2534 = vld [vmem:[#allocation6 + $0x64] sm:$0xf]
    %v2535 = vld [vmem:[#allocation6 + $0x68] sm:$0xf]
    %v2536 = vld [vmem:[#allocation6 + $0x6c] sm:$0xf]
    %v2537 = vld [vmem:[#allocation6 + $0x70] sm:$0xf]
    %v2538 = vld [vmem:[#allocation6 + $0x74] sm:$0xf]
    %v2539 = vld [vmem:[#allocation6 + $0x78] sm:$0xf]
    %v2540 = vld [vmem:[#allocation6 + $0x7c] sm:$0xf]
    %v2541 = vld [vmem:[#allocation6 + $0x80] sm:$0xf]
    %v2542 = vld [vmem:[#allocation6 + $0x84] sm:$0xf]
    %v2543 = vld [vmem:[#allocation6 + $0x88] sm:$0xf]
    %v2544 = vld [vmem:[#allocation6 + $0x8c] sm:$0xf]
    %v2545 = vld [vmem:[#allocation6 + $0x90] sm:$0xf]
    %v2546 = vld [vmem:[#allocation6 + $0x94] sm:$0xf]
    %v2547 = vld [vmem:[#allocation6 + $0x98] sm:$0xf]
    %v2548 = vld [vmem:[#allocation6 + $0x9c] sm:$0xf]
    %v2549 = vld [vmem:[#allocation6 + $0xa0] sm:$0xf]
    %v2550 = vld [vmem:[#allocation6 + $0xa4] sm:$0xf]
    %v2551 = vld [vmem:[#allocation6 + $0xa8] sm:$0xf]
    %v2552 = vld [vmem:[#allocation6 + $0xac] sm:$0xf]
    %v2553 = vld [vmem:[#allocation6 + $0xb0] sm:$0xf]
    %v2554 = vld [vmem:[#allocation6 + $0xb4] sm:$0xf]
    %v2555 = vld [vmem:[#allocation6 + $0xb8] sm:$0xf]
    %v2556 = vld [vmem:[#allocation6 + $0xbc] sm:$0xf]
    %v2557 = vld [vmem:[%s6] sm:$0x1]
    %v2559 = vlaneseq
    %v2560 = vshrl.u32 %v2559, 7
    %v2561 = vsub.s32 0, %v2560
    %v2562 = vrot.slane %v2557, %v2561
    %v2612 = vunpack.c.l.b16 %v2509
    %v2613 = vunpack.c.l.b16 %v2510
    %v2614 = vunpack.c.l.b16 %v2511
    %v2615 = vunpack.c.l.b16 %v2512
    %v2616 = vunpack.c.l.b16 %v2513
    %v2617 = vunpack.c.l.b16 %v2514
    %v2618 = vunpack.c.l.b16 %v2515
    %v2619 = vunpack.c.l.b16 %v2516
    %v2620 = vunpack.c.l.b16 %v2517
    %v2621 = vunpack.c.l.b16 %v2518
    %v2622 = vunpack.c.l.b16 %v2519
    %v2623 = vunpack.c.l.b16 %v2520
    %v2624 = vunpack.c.l.b16 %v2521
    %v2625 = vunpack.c.l.b16 %v2522
    %v2626 = vunpack.c.l.b16 %v2523
    %v2627 = vunpack.c.l.b16 %v2524
    %v2628 = vunpack.c.l.b16 %v2525
    %v2629 = vunpack.c.l.b16 %v2526
    %v2630 = vunpack.c.l.b16 %v2527
    %v2631 = vunpack.c.l.b16 %v2528
    %v2632 = vunpack.c.l.b16 %v2529
    %v2633 = vunpack.c.l.b16 %v2530
    %v2634 = vunpack.c.l.b16 %v2531
    %v2635 = vunpack.c.l.b16 %v2532
    %v2636 = vunpack.c.l.b16 %v2533
    %v2637 = vunpack.c.l.b16 %v2534
    %v2638 = vunpack.c.l.b16 %v2535
    %v2639 = vunpack.c.l.b16 %v2536
    %v2640 = vunpack.c.l.b16 %v2537
    %v2641 = vunpack.c.l.b16 %v2538
    %v2642 = vunpack.c.l.b16 %v2539
    %v2643 = vunpack.c.l.b16 %v2540
    %v2644 = vunpack.c.l.b16 %v2541
    %v2645 = vunpack.c.l.b16 %v2542
    %v2646 = vunpack.c.l.b16 %v2543
    %v2647 = vunpack.c.l.b16 %v2544
    %v2648 = vunpack.c.l.b16 %v2545
    %v2649 = vunpack.c.l.b16 %v2546
    %v2650 = vunpack.c.l.b16 %v2547
    %v2651 = vunpack.c.l.b16 %v2548
    %v2652 = vunpack.c.l.b16 %v2549
    %v2653 = vunpack.c.l.b16 %v2550
    %v2654 = vunpack.c.l.b16 %v2551
    %v2655 = vunpack.c.l.b16 %v2552
    %v2656 = vunpack.c.l.b16 %v2553
    %v2657 = vunpack.c.l.b16 %v2554
    %v2658 = vunpack.c.l.b16 %v2555
    %v2659 = vunpack.c.l.b16 %v2556
    %v2660 = vpack.c.b16 %v2613, %v2612
    %v2661 = vpack.c.b16 %v2615, %v2614
    %v2662 = vpack.c.b16 %v2617, %v2616
    %v2663 = vpack.c.b16 %v2619, %v2618
    %v2664 = vpack.c.b16 %v2621, %v2620
    %v2665 = vpack.c.b16 %v2623, %v2622
    %v2666 = vpack.c.b16 %v2625, %v2624
    %v2667 = vpack.c.b16 %v2627, %v2626
    %v2668 = vpack.c.b16 %v2629, %v2628
    %v2669 = vpack.c.b16 %v2631, %v2630
    %v2670 = vpack.c.b16 %v2633, %v2632
    %v2671 = vpack.c.b16 %v2635, %v2634
    %v2672 = vpack.c.b16 %v2637, %v2636
    %v2673 = vpack.c.b16 %v2639, %v2638
    %v2674 = vpack.c.b16 %v2641, %v2640
    %v2675 = vpack.c.b16 %v2643, %v2642
    %v2676 = vpack.c.b16 %v2645, %v2644
    %v2677 = vpack.c.b16 %v2647, %v2646
    %v2678 = vpack.c.b16 %v2649, %v2648
    %v2679 = vpack.c.b16 %v2651, %v2650
    %v2680 = vpack.c.b16 %v2653, %v2652
    %v2681 = vpack.c.b16 %v2655, %v2654
    %v2682 = vpack.c.b16 %v2657, %v2656
    %v2683 = vpack.c.b16 %v2659, %v2658
    %2708 = vmatprep.subr.bf16.mxu0 0
    %2709 = vmatpush1.bf16.msra.mxu0 %v2660
    %2710 = vmatprep.subr.bf16.mxu0 0
    %2711 = vmatpush1.bf16.msra.mxu0 %v2661
    %2712 = vmatprep.subr.bf16.mxu0 0
    %2713 = vmatpush1.bf16.msra.mxu0 %v2662
    %2714 = vmatprep.subr.bf16.mxu0 0
    %2715 = vmatpush1.bf16.msra.mxu0 %v2663
    %2716 = vmatprep.subr.bf16.mxu0 0
    %2717 = vmatpush1.bf16.msra.mxu0 %v2664
    %2718 = vmatprep.subr.bf16.mxu0 0
    %2719 = vmatpush1.bf16.msra.mxu0 %v2665
    %2720 = vmatprep.subr.bf16.mxu0 0
    %2721 = vmatpush1.bf16.msra.mxu0 %v2666
    %2722 = vmatprep.subr.bf16.mxu0 0
    %2723 = vmatpush1.bf16.msra.mxu0 %v2667
    %2724 = vmatprep.subr.bf16.mxu0 0
    %2725 = vmatpush1.bf16.msra.mxu0 %v2668
    %2726 = vmatprep.subr.bf16.mxu0 0
    %2727 = vmatpush1.bf16.msra.mxu0 %v2669
    %2728 = vmatprep.subr.bf16.mxu0 0
    %2729 = vmatpush1.bf16.msra.mxu0 %v2670
    %2730 = vmatprep.subr.bf16.mxu0 0
    %2731 = vmatpush1.bf16.msra.mxu0 %v2671
    %2732 = vmatprep.subr.bf16.mxu0 0
    %2733 = vmatpush1.bf16.msra.mxu0 %v2672
    %2734 = vmatprep.subr.bf16.mxu0 0
    %2735 = vmatpush1.bf16.msra.mxu0 %v2673
    %2736 = vmatprep.subr.bf16.mxu0 0
    %2737 = vmatpush1.bf16.msra.mxu0 %v2674
    %2738 = vmatprep.subr.bf16.mxu0 0
    %2739 = vmatpush1.bf16.msra.mxu0 %v2675
    %2740 = vmatprep.mubr.bf16.mxu0 %v2507
    %2741 = vmatmul.mubr.bf16.gmra.mrb[0].mxu0 %v2506
    %v2742 = vpop.f32.mrb[0].mxu0
    %v2743 = vadd.f32 %v2562, %v2742
    %v2744 = vpop.f32.mrb[0].mxu0
    %v2745 = vpop.f32.mrb[0].mxu0
    %v2746 = vadd.f32 %v2562, %v2745
    %v2747 = vpop.f32.mrb[0].mxu0
    %2748 = vdwg.mxu0
    %2749 = vmatprep.subr.bf16.mxu0 0
    %2750 = vmatpush1.bf16.msra.mxu0 %v2676
    %2751 = vmatprep.subr.bf16.mxu0 0
    %2752 = vmatpush1.bf16.msra.mxu0 %v2677
    %2753 = vmatprep.subr.bf16.mxu0 0
    %2754 = vmatpush1.bf16.msra.mxu0 %v2678
    %2755 = vmatprep.subr.bf16.mxu0 0
    %2756 = vmatpush1.bf16.msra.mxu0 %v2679
    %2757 = vmatprep.subr.bf16.mxu0 0
    %2758 = vmatpush1.bf16.msra.mxu0 %v2680
    %2759 = vmatprep.subr.bf16.mxu0 0
    %2760 = vmatpush1.bf16.msra.mxu0 %v2681
    %2761 = vmatprep.subr.bf16.mxu0 0
    %2762 = vmatpush1.bf16.msra.mxu0 %v2682
    %2763 = vmatprep.subr.bf16.mxu0 0
    %2764 = vmatpush1.bf16.msra.mxu0 %v2683
    %2765 = vmatprep.subr.bf16.mxu0 0
    %2766 = vmatpush1.bf16.msra.mxu0 0
    %2767 = vmatprep.subr.bf16.mxu0 0
    %2768 = vmatpush1.bf16.msra.mxu0 0
    %2769 = vmatprep.subr.bf16.mxu0 0
    %2770 = vmatpush1.bf16.msra.mxu0 0
    %2771 = vmatprep.subr.bf16.mxu0 0
    %2772 = vmatpush1.bf16.msra.mxu0 0
    %2773 = vmatprep.subr.bf16.mxu0 0
    %2774 = vmatpush1.bf16.msra.mxu0 0
    %2775 = vmatprep.subr.bf16.mxu0 0
    %2776 = vmatpush1.bf16.msra.mxu0 0
    %2777 = vmatprep.subr.bf16.mxu0 0
    %2778 = vmatpush1.bf16.msra.mxu0 0
    %2779 = vmatprep.subr.bf16.mxu0 0
    %2780 = vmatpush1.bf16.msra.mxu0 0
    %2781 = vmatprep.mubr.bf16.mxu0 0
    %2782 = vmatmul.mubr.bf16.gmra.mrb[0].mxu0 %v2508
    %v2783 = vpop.f32.mrb[0].mxu0
    %v2784 = vadd.f32 %v2743, %v2783
    %v2785 = vpop.f32.mrb[0].mxu0
    %v2786 = vpop.f32.mrb[0].mxu0
    %v2787 = vadd.f32 %v2746, %v2786
    %v2788 = vpop.f32.mrb[0].mxu0
    %2789 = vdwg.mxu0
    %2790 = vst [vmem:[%s7] sm:$0xff] %v2784
    %2791 = vst [vmem:[%s7 + $0x8] sm:$0xff] %v2787
    // Predicated region
    $region42: #{neural_net_forward.1} parent=1 // pred_check
      _
    $region43: #{neural_net_forward.1} parent=1 // pred_check_branch
      %2793 = sbr.rel (0) target = $region45
    $region44: #{neural_net_forward.1} parent=1 // pred_region
      _
    $region45: #{neural_net_forward.1} parent=1 // pred_fallthru
      _
    // Predicated region
    $region46: #{neural_net_forward.1} parent=1 // pred_check
      _
    $region47: #{neural_net_forward.1} parent=1 // pred_check_branch
      %2795 = sbr.rel (0) target = $region49
    $region48: #{neural_net_forward.1} parent=1 // pred_region
      _
    $region49: #{neural_net_forward.1} parent=1 // pred_fallthru
      _
    %2796 = vsyncpa [#allocation3], 1
    %2797 = vsyncpa [#allocation5], 1

</llo_original>
